<compile_context>
chip_gen: v5e
topology: v5e:2x2
jax: 0.10.0
libtpu: 0.0.40
codegen_flags: <defaults>
</compile_context>

<pallas_src>
import functools

import jax
import jax.numpy as jnp
from jax.experimental import pallas as pl
from jax.experimental.pallas import tpu as pltpu


_BIAS_PAD = 8  # sublane-aligned width of the ones block that carries the folded biases


# ----------------------------------------------------------------------------
# Fused kernel: all layers in VMEM, batch folded into lanes.
# ----------------------------------------------------------------------------
def _wavenet_fused_kernel(x_ref, wi_ref, bi_ref, wg_ref, wk_ref, skips_ref,
                          *, dilations, c0, seq_len):
    f32, bf16 = jnp.float32, jnp.bfloat16
    nb = x_ref.shape[0]
    L = seq_len
    BL = nb * L

    # Fold batch into lanes: (nb, c_in, L) -> (c_in, nb*L), batch-major along lanes.
    x = x_ref[0] if nb == 1 else jnp.concatenate([x_ref[b] for b in range(nb)], axis=1)

    # Position-within-sequence of every lane; masks the rotations at segment edges.
    pos = jax.lax.broadcasted_iota(jnp.int32, (1, BL), 1) % L
    ones_blk = jnp.ones((_BIAS_PAD, BL), f32)   # rides the matmuls to apply folded biases

    def shift_right(v, d):
        """y[:, l] = v[:, l-d] within each length-L segment, 0 for l < d."""
        if d == 0:
            return v
        rolled = jnp.concatenate([v[:, BL - d:], v[:, :BL - d]], axis=1)  # lane roll +d
        return jnp.where(pos >= d, rolled, 0.0)

    def shift_left(v, d):
        """y[:, l] = v[:, l+d] within each length-L segment, 0 for l >= L-d."""
        if d == 0:
            return v
        rolled = jnp.concatenate([v[:, d:], v[:, :d]], axis=1)            # lane roll -d
        return jnp.where(pos < L - d, rolled, 0.0)

    # ---- init conv (k=3, pad=1); eval-mode BatchNorm + bias folded into wi/bi ----
    # TODO(synk): training-mode BatchNorm (cross-batch statistics) not implemented.
    wi = wi_ref[...]                                   # (3, c0, c_in), bf16, BN-folded
    z = (jnp.dot(wi[0], shift_right(x, 1).astype(bf16), preferred_element_type=f32)
         + jnp.dot(wi[1], x.astype(bf16), preferred_element_type=f32)
         + jnp.dot(wi[2], shift_left(x, 1).astype(bf16), preferred_element_type=f32)
         + bi_ref[...])
    h = z * jax.nn.sigmoid(z)                          # SiLU, kept f32

    # ---- WaveNet layers, fully unrolled (dilations are static Python ints) ----
    # TODO(synk): for deep configs switch to lax.fori_loop with an SMEM dilation table.
    for i, d in enumerate(dilations):
        # merged dilated tanh+sigmoid conv; biases applied via the ones block columns
        hin = jnp.concatenate(
            [shift_right(h, d), h, shift_left(h, d), ones_blk], axis=0).astype(bf16)
        ts = jnp.dot(wg_ref[i], hin, preferred_element_type=f32)       # (2*c0, BL)
        g = jnp.tanh(ts[:c0]) * jax.nn.sigmoid(ts[c0:])                # gated unit, f32

        ga = jnp.concatenate([g, ones_blk], axis=0).astype(bf16)       # (c0+8, BL)
        # 1x1 skip conv + identity residual (equal channels in this config).
        # TODO(synk): parameterized shortcut (1x1 conv + BN) when in != out channels.
        h = jnp.dot(wk_ref[i], ga, preferred_element_type=f32) + h
        # PyTorch: `skip = x; x += residual` (in place) -> skip aliases post-residual h.
        for b in range(nb):
            skips_ref[i, b, :, :] = h[:, b * L:(b + 1) * L].astype(skips_ref.dtype)


# ----------------------------------------------------------------------------
# Wrapper: single pallas_call for the whole forward.
# ----------------------------------------------------------------------------
def _replicated_spec(arr):
    zeros = (0,) * arr.ndim
    return pl.BlockSpec(arr.shape, lambda g, _z=zeros: _z)


def wavenet_convs_forward(x, params, *, dilations, feat_sizes, depths,
                          batch_per_step=None):
    """Returns (out, block_skips) matching WaveNetConvs.forward.

    batch_per_step=None (default) folds the whole batch into the lane dimension and
    runs a single grid step (best on single-TC v5e/v6e).  Set batch_per_step=1 on
    v7x so grid=(B,) with "parallel" semantics splits the batch across both cores.
    """
    B, c_in, L = x.shape
    c0 = feat_sizes[0]
    n_layers = len(dilations)
    nb = B if batch_per_step is None else batch_per_step
    assert B % nb == 0
    n_steps = B // nb

    kernel = functools.partial(_wavenet_fused_kernel, dilations=tuple(dilations),
                               c0=c0, seq_len=L)

    # TODO(synk): for long sequences add an L-tiled grid axis with a sum(dilations)+1
    # halo and an explicit vmem_limit_bytes (v7x only has 64 MiB VMEM / 32 MiB scoped).
    skip_slab = pl.pallas_call(
        kernel,
        out_shape=jax.ShapeDtypeStruct((n_layers, B, c0, L), x.dtype),
        grid=(n_steps,),
        in_specs=[
            pl.BlockSpec((nb, c_in, L), lambda g: (g, 0, 0)),
            _replicated_spec(params["w_init"]),
            _replicated_spec(params["b_init"]),
            _replicated_spec(params["wg"]),
            _replicated_spec(params["wk"]),
        ],
        out_specs=pl.BlockSpec((n_layers, nb, c0, L), lambda g: (0, g, 0, 0)),
        compiler_params=pltpu.CompilerParams(dimension_semantics=("parallel",)),
    )(x, params["w_init"], params["b_init"], params["wg"], params["wk"])

    # Last skip aliases the final output (PyTorch in-place `x += residual`).
    out_x = skip_slab[n_layers - 1]
    n_blocks, depth = len(depths), depths[0]
    block_skips = skip_slab.reshape(n_blocks, depth, B, c0, L)   # metadata-only reshape
    return out_x, block_skips


# ----------------------------------------------------------------------------
# Deterministic parameters: canonical per-layer f32 weights (reference) plus the
# folded / packed / bf16 layer-major slabs the kernel consumes.
# ----------------------------------------------------------------------------
def make_params(key, in_channels, feat_sizes=(16, 16), depths=(2, 2)):
    assert len(set(feat_sizes)) == 1, "identity residual / torch.stack need equal channels"
    assert len(set(depths)) == 1, "torch.stack of block skips needs equal depths"
    c0 = feat_sizes[0]
    keys = iter(jax.random.split(key, 128))
    nrm = lambda shape, s: s * jax.random.normal(next(keys), shape, jnp.float32)

    canon = {
        "w_init": nrm((3, c0, in_channels), 0.2),
        "b_init": nrm((c0, 1), 0.1),
        "gamma": 1.0 + nrm((c0, 1), 0.1),
        "beta": nrm((c0, 1), 0.1),
        "rmean": nrm((c0, 1), 0.05),
        "rvar": 1.0 + 0.1 * jax.random.uniform(next(keys), (c0, 1), jnp.float32),
        "layers": [],
    }

    dilations = []
    in_out = [(c0, c0)] + list(zip(feat_sizes, feat_sizes[1:]))
    for (cin, cout), depth in zip(in_out, depths):
        for i in range(depth):
            dilations.append(2 ** i)
            canon["layers"].append({
                "wt": nrm((3, cout, cin), 0.2), "bt": nrm((cout, 1), 0.1),
                "ws": nrm((3, cout, cin), 0.2), "bs": nrm((cout, 1), 0.1),
                "wk": nrm((cout, cin), 0.2), "bk": nrm((cout, 1), 0.1),
            })

    # ---- fold + pack for the kernel (bf16 matmul operands, layer-major slabs) ----
    eps = 1e-5
    bn_scale = canon["gamma"] * jax.lax.rsqrt(canon["rvar"] + eps)
    bn_shift = canon["beta"] - canon["rmean"] * bn_scale
    w_init = (canon["w_init"] * bn_scale[None]).astype(jnp.bfloat16)      # (3, c0, c_in)
    b_init = bn_scale * canon["b_init"] + bn_shift                        # (c0, 1), f32

    def with_bias_cols(w, b):
        # [w | b | 0...0]: the kernel's 8-row ones block applies the bias via the MXU
        zeros = jnp.zeros((w.shape[0], _BIAS_PAD - 1), jnp.float32)
        return jnp.concatenate([w, b, zeros], axis=1)

    wg_list, wk_list = [], []
    for lyr in canon["layers"]:
        wt, ws = lyr["wt"], lyr["ws"]
        # rows: [tanh ; sigmoid], cols: [x(l-d) | x(l) | x(l+d) | bias | pad]
        w_gate = jnp.concatenate(
            [jnp.concatenate([wt[0], wt[1], wt[2]], axis=1),
             jnp.concatenate([ws[0], ws[1], ws[2]], axis=1)], axis=0)     # (2*c0, 3*c0)
        b_gate = jnp.concatenate([lyr["bt"], lyr["bs"]], axis=0)          # (2*c0, 1)
        wg_list.append(with_bias_cols(w_gate, b_gate))                    # (2*c0, 3*c0+8)
        wk_list.append(with_bias_cols(lyr["wk"], lyr["bk"]))              # (c0, c0+8)

    kernel_params = {
        "w_init": w_init,
        "b_init": b_init,
        "wg": jnp.stack(wg_list, 0).astype(jnp.bfloat16),   # (n_layers, 2*c0, 3*c0+8)
        "wk": jnp.stack(wk_list, 0).astype(jnp.bfloat16),   # (n_layers, c0, c0+8)
    }
    return kernel_params, canon, tuple(dilations)


# ----------------------------------------------------------------------------
# Pure-JAX reference (from the canonical f32 params; also validates the packing).
# ----------------------------------------------------------------------------
def _reference_forward(x, canon, dilations, feat_sizes, depths):
    L = x.shape[-1]
    dot = functools.partial(jnp.einsum, precision=jax.lax.Precision.HIGHEST)

    def dilated3(h, w, b, d):
        hp = jnp.pad(h, ((0, 0), (0, 0), (d, d)))
        return (dot("oc,bcl->bol", w[0], hp[:, :, 0:L])
                + dot("oc,bcl->bol", w[1], hp[:, :, d:d + L])
                + dot("oc,bcl->bol", w[2], hp[:, :, 2 * d:2 * d + L])
                + b[None])

    z = dilated3(x, canon["w_init"], canon["b_init"], 1)
    scale = canon["gamma"] * jax.lax.rsqrt(canon["rvar"] + 1e-5)
    z = (z - canon["rmean"][None]) * scale[None] + canon["beta"][None]    # eval-mode BN
    h = z * jax.nn.sigmoid(z)                                             # SiLU

    skips = []
    for lyr, d in zip(canon["layers"], dilations):
        t = dilated3(h, lyr["wt"], lyr["bt"], d)
        s = dilated3(h, lyr["ws"], lyr["bs"], d)
        g = jnp.tanh(t) * jax.nn.sigmoid(s)
        h = dot("oc,bcl->bol", lyr["wk"], g) + lyr["bk"][None] + h
        skips.append(h)
    n_blocks, depth = len(depths), depths[0]
    return h, jnp.stack(skips, axis=0).reshape(n_blocks, depth, *h.shape)


# ----------------------------------------------------------------------------
if __name__ == "__main__":
    B, C_IN, L = 2, 4, 128
    FEAT_SIZES, DEPTHS = (16, 16), (2, 2)

    key = jax.random.PRNGKey(0)
    kx, kp = jax.random.split(key)
    x = jax.random.normal(kx, (B, C_IN, L), jnp.float32)
    kernel_params, canon, dils = make_params(kp, C_IN, FEAT_SIZES, DEPTHS)

    fwd = jax.jit(functools.partial(wavenet_convs_forward,
                                    dilations=dils,
                                    feat_sizes=FEAT_SIZES,
                                    depths=DEPTHS))
    out, block_skips = fwd(x, kernel_params)
    jax.block_until_ready((out, block_skips))

    assert out.shape == (B, FEAT_SIZES[-1], L)
    assert block_skips.shape == (len(DEPTHS), DEPTHS[0], B, FEAT_SIZES[-1], L)

    ref_out, ref_skips = _reference_forward(x, canon, dils, FEAT_SIZES, DEPTHS)
    # Kernel uses bf16 MXU operands (weights + activations) vs. an f32 HIGHEST
    # reference, so the tolerance reflects bf16 mantissa, not a logic margin.
    assert float(jnp.max(jnp.abs(out - ref_out))) < 1e-1
    assert float(jnp.max(jnp.abs(block_skips - ref_skips))) < 1e-1

    print("KERNEL_OK")
</pallas_src>

<mosaic_0001>
module attributes {stable_mosaic.version = 11 : i64} {
  func.func @_wavenet_fused_kernel(%arg0: i32, %arg1: memref<2x4x128xf32, #tpu.memory_space<vmem>>, %arg2: memref<3x16x4xbf16, #tpu.memory_space<vmem>>, %arg3: memref<16x1xf32, #tpu.memory_space<vmem>>, %arg4: memref<4x32x56xbf16, #tpu.memory_space<vmem>>, %arg5: memref<4x16x24xbf16, #tpu.memory_space<vmem>>, %arg6: memref<4x2x16x128xf32, #tpu.memory_space<vmem>>) attributes {dimension_semantics = [#tpu.dimension_semantics<parallel>], iteration_bounds = array<i64: 1>, scalar_prefetch = 0 : i64, scratch_operands = 0 : i64, tpu.core_type = #tpu.core_type<tc>, window_params = [{transform_indices = @transform_0, window_bounds = array<i64: 2, 4, 128>}, {pipeline_mode = #tpu.pipeline_mode<synchronous>, transform_indices = @transform_1, window_bounds = array<i64: 3, 16, 4>}, {pipeline_mode = #tpu.pipeline_mode<synchronous>, transform_indices = @transform_2, window_bounds = array<i64: 16, 1>}, {pipeline_mode = #tpu.pipeline_mode<synchronous>, transform_indices = @transform_3, window_bounds = array<i64: 4, 32, 56>}, {pipeline_mode = #tpu.pipeline_mode<synchronous>, transform_indices = @transform_4, window_bounds = array<i64: 4, 16, 24>}, {transform_indices = @transform_5, window_bounds = array<i64: 4, 2, 16, 128>}]} {
    %c0 = arith.constant 0 : index
    %c0_0 = arith.constant 0 : index
    %c0_1 = arith.constant 0 : index
    %0 = vector.load %arg1[%c0, %c0_0, %c0_1] : memref<2x4x128xf32, #tpu.memory_space<vmem>>, vector<1x4x128xf32>
    %1 = vector.shape_cast %0 : vector<1x4x128xf32> to vector<4x128xf32>
    %c1 = arith.constant 1 : index
    %c0_2 = arith.constant 0 : index
    %c0_3 = arith.constant 0 : index
    %2 = vector.load %arg1[%c1, %c0_2, %c0_3] : memref<2x4x128xf32, #tpu.memory_space<vmem>>, vector<1x4x128xf32>
    %3 = vector.shape_cast %2 : vector<1x4x128xf32> to vector<4x128xf32>
    %4 = tpu.concatenate %1, %3 in 1 : vector<4x128xf32>, vector<4x128xf32> -> vector<4x256xf32>
    %5 = tpu.iota {dimensions = array<i32: 1>} : vector<1x256xi32>
    %c128_i32 = arith.constant 128 : i32
    %c0_i32 = arith.constant 0 : i32
    %6 = arith.cmpi eq, %c128_i32, %c0_i32 : i32
    %c1_i32 = arith.constant 1 : i32
    %7 = arith.select %6, %c1_i32, %c128_i32 : i32
    %8 = vector.broadcast %7 : i32 to vector<1x256xi32>
    %9 = arith.remsi %5, %8 : vector<1x256xi32>
    %c0_i32_4 = arith.constant 0 : i32
    %10 = vector.broadcast %c0_i32_4 : i32 to vector<1x256xi32>
    %11 = arith.cmpi ne, %9, %10 : vector<1x256xi32>
    %c0_i32_5 = arith.constant 0 : i32
    %12 = vector.broadcast %c0_i32_5 : i32 to vector<1x256xi32>
    %13 = arith.cmpi slt, %9, %12 : vector<1x256xi32>
    %c0_i32_6 = arith.constant 0 : i32
    %14 = arith.cmpi slt, %7, %c0_i32_6 : i32
    %15 = vector.broadcast %14 : i1 to vector<1x256xi1>
    %16 = vector.broadcast %15 : vector<1x256xi1> to vector<1x256xi1>
    %17 = arith.xori %13, %16 : vector<1x256xi1>
    %18 = arith.andi %17, %11 : vector<1x256xi1>
    %19 = vector.broadcast %7 : i32 to vector<1x256xi32>
    %20 = arith.addi %9, %19 : vector<1x256xi32>
    %21 = arith.select %18, %20, %9 : vector<1x256xi1>, vector<1x256xi32>
    %cst = arith.constant 1.000000e+00 : f32
    %22 = vector.broadcast %cst : f32 to vector<8x256xf32>
    %c0_7 = arith.constant 0 : index
    %c0_8 = arith.constant 0 : index
    %c0_9 = arith.constant 0 : index
    %23 = vector.load %arg2[%c0_7, %c0_8, %c0_9] : memref<3x16x4xbf16, #tpu.memory_space<vmem>>, vector<3x16x4xbf16>
    %24 = vector.extract_strided_slice %23 {offsets = [0, 0, 0], sizes = [1, 16, 4], strides = [1, 1, 1]} : vector<3x16x4xbf16> to vector<1x16x4xbf16>
    %25 = vector.shape_cast %24 : vector<1x16x4xbf16> to vector<16x4xbf16>
    %26 = vector.extract_strided_slice %4 {offsets = [0, 255], sizes = [4, 1], strides = [1, 1]} : vector<4x256xf32> to vector<4x1xf32>
    %27 = vector.extract_strided_slice %4 {offsets = [0, 0], sizes = [4, 255], strides = [1, 1]} : vector<4x256xf32> to vector<4x255xf32>
    %28 = tpu.concatenate %26, %27 in 1 : vector<4x1xf32>, vector<4x255xf32> -> vector<4x256xf32>
    %c1_i32_10 = arith.constant 1 : i32
    %29 = vector.broadcast %c1_i32_10 : i32 to vector<1x256xi32>
    %30 = arith.cmpi sge, %21, %29 : vector<1x256xi32>
    %cst_11 = arith.constant 0.000000e+00 : f32
    %31 = vector.shape_cast %30 : vector<1x256xi1> to vector<1x256xi1>
    %32 = vector.broadcast %31 : vector<1x256xi1> to vector<4x256xi1>
    %33 = vector.broadcast %cst_11 : f32 to vector<4x256xf32>
    %34 = arith.select %32, %28, %33 : vector<4x256xi1>, vector<4x256xf32>
    %35 = arith.truncf %34 : vector<4x256xf32> to vector<4x256xbf16>
    %cst_12 = arith.constant dense<0.000000e+00> : vector<16x256xf32>
    %36 = tpu.matmul %25, %35, %cst_12 {dimension_numbers = #tpu.dot_dimension_numbers<[1], [0], [0], [1], [0, 0, 1, 1], [], []>} : vector<16x4xbf16>, vector<4x256xbf16>, vector<16x256xf32> -> vector<16x256xf32>
    %37 = vector.extract_strided_slice %23 {offsets = [1, 0, 0], sizes = [1, 16, 4], strides = [1, 1, 1]} : vector<3x16x4xbf16> to vector<1x16x4xbf16>
    %38 = vector.shape_cast %37 : vector<1x16x4xbf16> to vector<16x4xbf16>
    %39 = arith.truncf %4 : vector<4x256xf32> to vector<4x256xbf16>
    %cst_13 = arith.constant dense<0.000000e+00> : vector<16x256xf32>
    %40 = tpu.matmul %38, %39, %cst_13 {dimension_numbers = #tpu.dot_dimension_numbers<[1], [0], [0], [1], [0, 0, 1, 1], [], []>} : vector<16x4xbf16>, vector<4x256xbf16>, vector<16x256xf32> -> vector<16x256xf32>
    %41 = arith.addf %36, %40 : vector<16x256xf32>
    %42 = vector.extract_strided_slice %23 {offsets = [2, 0, 0], sizes = [1, 16, 4], strides = [1, 1, 1]} : vector<3x16x4xbf16> to vector<1x16x4xbf16>
    %43 = vector.shape_cast %42 : vector<1x16x4xbf16> to vector<16x4xbf16>
    %44 = vector.extract_strided_slice %4 {offsets = [0, 1], sizes = [4, 255], strides = [1, 1]} : vector<4x256xf32> to vector<4x255xf32>
    %45 = vector.extract_strided_slice %4 {offsets = [0, 0], sizes = [4, 1], strides = [1, 1]} : vector<4x256xf32> to vector<4x1xf32>
    %46 = tpu.concatenate %44, %45 in 1 : vector<4x255xf32>, vector<4x1xf32> -> vector<4x256xf32>
    %c127_i32 = arith.constant 127 : i32
    %47 = vector.broadcast %c127_i32 : i32 to vector<1x256xi32>
    %48 = arith.cmpi slt, %21, %47 : vector<1x256xi32>
    %cst_14 = arith.constant 0.000000e+00 : f32
    %49 = vector.shape_cast %48 : vector<1x256xi1> to vector<1x256xi1>
    %50 = vector.broadcast %49 : vector<1x256xi1> to vector<4x256xi1>
    %51 = vector.broadcast %cst_14 : f32 to vector<4x256xf32>
    %52 = arith.select %50, %46, %51 : vector<4x256xi1>, vector<4x256xf32>
    %53 = arith.truncf %52 : vector<4x256xf32> to vector<4x256xbf16>
    %cst_15 = arith.constant dense<0.000000e+00> : vector<16x256xf32>
    %54 = tpu.matmul %43, %53, %cst_15 {dimension_numbers = #tpu.dot_dimension_numbers<[1], [0], [0], [1], [0, 0, 1, 1], [], []>} : vector<16x4xbf16>, vector<4x256xbf16>, vector<16x256xf32> -> vector<16x256xf32>
    %55 = arith.addf %41, %54 : vector<16x256xf32>
    %c0_16 = arith.constant 0 : index
    %c0_17 = arith.constant 0 : index
    %56 = vector.load %arg3[%c0_16, %c0_17] : memref<16x1xf32, #tpu.memory_space<vmem>>, vector<16x1xf32>
    %57 = vector.broadcast %56 : vector<16x1xf32> to vector<16x256xf32>
    %58 = arith.addf %55, %57 : vector<16x256xf32>
    %59 = arith.negf %58 : vector<16x256xf32>
    %60 = math.exp %59 : vector<16x256xf32>
    %cst_18 = arith.constant 1.000000e+00 : f32
    %61 = vector.broadcast %cst_18 : f32 to vector<16x256xf32>
    %62 = arith.addf %61, %60 : vector<16x256xf32>
    %63 = arith.divf %61, %62 : vector<16x256xf32>
    %64 = arith.mulf %58, %63 : vector<16x256xf32>
    %65 = vector.extract_strided_slice %64 {offsets = [0, 255], sizes = [16, 1], strides = [1, 1]} : vector<16x256xf32> to vector<16x1xf32>
    %66 = vector.extract_strided_slice %64 {offsets = [0, 0], sizes = [16, 255], strides = [1, 1]} : vector<16x256xf32> to vector<16x255xf32>
    %67 = tpu.concatenate %65, %66 in 1 : vector<16x1xf32>, vector<16x255xf32> -> vector<16x256xf32>
    %c1_i32_19 = arith.constant 1 : i32
    %68 = vector.broadcast %c1_i32_19 : i32 to vector<1x256xi32>
    %69 = arith.cmpi sge, %21, %68 : vector<1x256xi32>
    %cst_20 = arith.constant 0.000000e+00 : f32
    %70 = vector.shape_cast %69 : vector<1x256xi1> to vector<1x256xi1>
    %71 = vector.broadcast %70 : vector<1x256xi1> to vector<16x256xi1>
    %72 = vector.broadcast %cst_20 : f32 to vector<16x256xf32>
    %73 = arith.select %71, %67, %72 : vector<16x256xi1>, vector<16x256xf32>
    %74 = vector.extract_strided_slice %64 {offsets = [0, 1], sizes = [16, 255], strides = [1, 1]} : vector<16x256xf32> to vector<16x255xf32>
    %75 = vector.extract_strided_slice %64 {offsets = [0, 0], sizes = [16, 1], strides = [1, 1]} : vector<16x256xf32> to vector<16x1xf32>
    %76 = tpu.concatenate %74, %75 in 1 : vector<16x255xf32>, vector<16x1xf32> -> vector<16x256xf32>
    %c127_i32_21 = arith.constant 127 : i32
    %77 = vector.broadcast %c127_i32_21 : i32 to vector<1x256xi32>
    %78 = arith.cmpi slt, %21, %77 : vector<1x256xi32>
    %cst_22 = arith.constant 0.000000e+00 : f32
    %79 = vector.shape_cast %78 : vector<1x256xi1> to vector<1x256xi1>
    %80 = vector.broadcast %79 : vector<1x256xi1> to vector<16x256xi1>
    %81 = vector.broadcast %cst_22 : f32 to vector<16x256xf32>
    %82 = arith.select %80, %76, %81 : vector<16x256xi1>, vector<16x256xf32>
    %83 = tpu.concatenate %73, %64, %82, %22 in 0 : vector<16x256xf32>, vector<16x256xf32>, vector<16x256xf32>, vector<8x256xf32> -> vector<56x256xf32>
    %84 = arith.truncf %83 : vector<56x256xf32> to vector<56x256xbf16>
    %c0_23 = arith.constant 0 : index
    %c0_24 = arith.constant 0 : index
    %c0_25 = arith.constant 0 : index
    %85 = vector.load %arg4[%c0_23, %c0_24, %c0_25] : memref<4x32x56xbf16, #tpu.memory_space<vmem>>, vector<1x32x56xbf16>
    %86 = vector.shape_cast %85 : vector<1x32x56xbf16> to vector<32x56xbf16>
    %cst_26 = arith.constant dense<0.000000e+00> : vector<32x256xf32>
    %87 = tpu.matmul %86, %84, %cst_26 {dimension_numbers = #tpu.dot_dimension_numbers<[1], [0], [0], [1], [0, 0, 1, 1], [], []>} : vector<32x56xbf16>, vector<56x256xbf16>, vector<32x256xf32> -> vector<32x256xf32>
    %88 = vector.extract_strided_slice %87 {offsets = [0, 0], sizes = [16, 256], strides = [1, 1]} : vector<32x256xf32> to vector<16x256xf32>
    %89 = math.tanh %88 : vector<16x256xf32>
    %90 = vector.extract_strided_slice %87 {offsets = [16, 0], sizes = [16, 256], strides = [1, 1]} : vector<32x256xf32> to vector<16x256xf32>
    %91 = arith.negf %90 : vector<16x256xf32>
    %92 = math.exp %91 : vector<16x256xf32>
    %cst_27 = arith.constant 1.000000e+00 : f32
    %93 = vector.broadcast %cst_27 : f32 to vector<16x256xf32>
    %94 = arith.addf %93, %92 : vector<16x256xf32>
    %95 = arith.divf %93, %94 : vector<16x256xf32>
    %96 = arith.mulf %89, %95 : vector<16x256xf32>
    %97 = tpu.concatenate %96, %22 in 0 : vector<16x256xf32>, vector<8x256xf32> -> vector<24x256xf32>
    %98 = arith.truncf %97 : vector<24x256xf32> to vector<24x256xbf16>
    %c0_28 = arith.constant 0 : index
    %c0_29 = arith.constant 0 : index
    %c0_30 = arith.constant 0 : index
    %99 = vector.load %arg5[%c0_28, %c0_29, %c0_30] : memref<4x16x24xbf16, #tpu.memory_space<vmem>>, vector<1x16x24xbf16>
    %100 = vector.shape_cast %99 : vector<1x16x24xbf16> to vector<16x24xbf16>
    %cst_31 = arith.constant dense<0.000000e+00> : vector<16x256xf32>
    %101 = tpu.matmul %100, %98, %cst_31 {dimension_numbers = #tpu.dot_dimension_numbers<[1], [0], [0], [1], [0, 0, 1, 1], [], []>} : vector<16x24xbf16>, vector<24x256xbf16>, vector<16x256xf32> -> vector<16x256xf32>
    %102 = arith.addf %101, %64 : vector<16x256xf32>
    %103 = vector.extract_strided_slice %102 {offsets = [0, 0], sizes = [16, 128], strides = [1, 1]} : vector<16x256xf32> to vector<16x128xf32>
    %c0_32 = arith.constant 0 : index
    %c0_33 = arith.constant 0 : index
    %c0_34 = arith.constant 0 : index
    %c0_35 = arith.constant 0 : index
    %104 = vector.load %arg6[%c0_32, %c0_33, %c0_34, %c0_35] : memref<4x2x16x128xf32, #tpu.memory_space<vmem>>, vector<1x1x16x128xf32>
    %105 = vector.shape_cast %104 : vector<1x1x16x128xf32> to vector<16x128xf32>
    %106 = vector.shape_cast %103 : vector<16x128xf32> to vector<1x1x16x128xf32>
    tpu.vector_store %arg6[%c0_32, %c0_33, %c0_34, %c0_35], %106 {strides = array<i32>} : memref<4x2x16x128xf32, #tpu.memory_space<vmem>>, vector<1x1x16x128xf32>,
    %107 = vector.extract_strided_slice %102 {offsets = [0, 128], sizes = [16, 128], strides = [1, 1]} : vector<16x256xf32> to vector<16x128xf32>
    %c0_36 = arith.constant 0 : index
    %c1_37 = arith.constant 1 : index
    %c0_38 = arith.constant 0 : index
    %c0_39 = arith.constant 0 : index
    %108 = vector.load %arg6[%c0_36, %c1_37, %c0_38, %c0_39] : memref<4x2x16x128xf32, #tpu.memory_space<vmem>>, vector<1x1x16x128xf32>
    %109 = vector.shape_cast %108 : vector<1x1x16x128xf32> to vector<16x128xf32>
    %110 = vector.shape_cast %107 : vector<16x128xf32> to vector<1x1x16x128xf32>
    tpu.vector_store %arg6[%c0_36, %c1_37, %c0_38, %c0_39], %110 {strides = array<i32>} : memref<4x2x16x128xf32, #tpu.memory_space<vmem>>, vector<1x1x16x128xf32>,
    %111 = vector.extract_strided_slice %102 {offsets = [0, 254], sizes = [16, 2], strides = [1, 1]} : vector<16x256xf32> to vector<16x2xf32>
    %112 = vector.extract_strided_slice %102 {offsets = [0, 0], sizes = [16, 254], strides = [1, 1]} : vector<16x256xf32> to vector<16x254xf32>
    %113 = tpu.concatenate %111, %112 in 1 : vector<16x2xf32>, vector<16x254xf32> -> vector<16x256xf32>
    %c2_i32 = arith.constant 2 : i32
    %114 = vector.broadcast %c2_i32 : i32 to vector<1x256xi32>
    %115 = arith.cmpi sge, %21, %114 : vector<1x256xi32>
    %cst_40 = arith.constant 0.000000e+00 : f32
    %116 = vector.shape_cast %115 : vector<1x256xi1> to vector<1x256xi1>
    %117 = vector.broadcast %116 : vector<1x256xi1> to vector<16x256xi1>
    %118 = vector.broadcast %cst_40 : f32 to vector<16x256xf32>
    %119 = arith.select %117, %113, %118 : vector<16x256xi1>, vector<16x256xf32>
    %120 = vector.extract_strided_slice %102 {offsets = [0, 2], sizes = [16, 254], strides = [1, 1]} : vector<16x256xf32> to vector<16x254xf32>
    %121 = vector.extract_strided_slice %102 {offsets = [0, 0], sizes = [16, 2], strides = [1, 1]} : vector<16x256xf32> to vector<16x2xf32>
    %122 = tpu.concatenate %120, %121 in 1 : vector<16x254xf32>, vector<16x2xf32> -> vector<16x256xf32>
    %c126_i32 = arith.constant 126 : i32
    %123 = vector.broadcast %c126_i32 : i32 to vector<1x256xi32>
    %124 = arith.cmpi slt, %21, %123 : vector<1x256xi32>
    %cst_41 = arith.constant 0.000000e+00 : f32
    %125 = vector.shape_cast %124 : vector<1x256xi1> to vector<1x256xi1>
    %126 = vector.broadcast %125 : vector<1x256xi1> to vector<16x256xi1>
    %127 = vector.broadcast %cst_41 : f32 to vector<16x256xf32>
    %128 = arith.select %126, %122, %127 : vector<16x256xi1>, vector<16x256xf32>
    %129 = tpu.concatenate %119, %102, %128, %22 in 0 : vector<16x256xf32>, vector<16x256xf32>, vector<16x256xf32>, vector<8x256xf32> -> vector<56x256xf32>
    %130 = arith.truncf %129 : vector<56x256xf32> to vector<56x256xbf16>
    %c1_42 = arith.constant 1 : index
    %c0_43 = arith.constant 0 : index
    %c0_44 = arith.constant 0 : index
    %131 = vector.load %arg4[%c1_42, %c0_43, %c0_44] : memref<4x32x56xbf16, #tpu.memory_space<vmem>>, vector<1x32x56xbf16>
    %132 = vector.shape_cast %131 : vector<1x32x56xbf16> to vector<32x56xbf16>
    %cst_45 = arith.constant dense<0.000000e+00> : vector<32x256xf32>
    %133 = tpu.matmul %132, %130, %cst_45 {dimension_numbers = #tpu.dot_dimension_numbers<[1], [0], [0], [1], [0, 0, 1, 1], [], []>} : vector<32x56xbf16>, vector<56x256xbf16>, vector<32x256xf32> -> vector<32x256xf32>
    %134 = vector.extract_strided_slice %133 {offsets = [0, 0], sizes = [16, 256], strides = [1, 1]} : vector<32x256xf32> to vector<16x256xf32>
    %135 = math.tanh %134 : vector<16x256xf32>
    %136 = vector.extract_strided_slice %133 {offsets = [16, 0], sizes = [16, 256], strides = [1, 1]} : vector<32x256xf32> to vector<16x256xf32>
    %137 = arith.negf %136 : vector<16x256xf32>
    %138 = math.exp %137 : vector<16x256xf32>
    %cst_46 = arith.constant 1.000000e+00 : f32
    %139 = vector.broadcast %cst_46 : f32 to vector<16x256xf32>
    %140 = arith.addf %139, %138 : vector<16x256xf32>
    %141 = arith.divf %139, %140 : vector<16x256xf32>
    %142 = arith.mulf %135, %141 : vector<16x256xf32>
    %143 = tpu.concatenate %142, %22 in 0 : vector<16x256xf32>, vector<8x256xf32> -> vector<24x256xf32>
    %144 = arith.truncf %143 : vector<24x256xf32> to vector<24x256xbf16>
    %c1_47 = arith.constant 1 : index
    %c0_48 = arith.constant 0 : index
    %c0_49 = arith.constant 0 : index
    %145 = vector.load %arg5[%c1_47, %c0_48, %c0_49] : memref<4x16x24xbf16, #tpu.memory_space<vmem>>, vector<1x16x24xbf16>
    %146 = vector.shape_cast %145 : vector<1x16x24xbf16> to vector<16x24xbf16>
    %cst_50 = arith.constant dense<0.000000e+00> : vector<16x256xf32>
    %147 = tpu.matmul %146, %144, %cst_50 {dimension_numbers = #tpu.dot_dimension_numbers<[1], [0], [0], [1], [0, 0, 1, 1], [], []>} : vector<16x24xbf16>, vector<24x256xbf16>, vector<16x256xf32> -> vector<16x256xf32>
    %148 = arith.addf %147, %102 : vector<16x256xf32>
    %149 = vector.extract_strided_slice %148 {offsets = [0, 0], sizes = [16, 128], strides = [1, 1]} : vector<16x256xf32> to vector<16x128xf32>
    %c1_51 = arith.constant 1 : index
    %c0_52 = arith.constant 0 : index
    %c0_53 = arith.constant 0 : index
    %c0_54 = arith.constant 0 : index
    %150 = vector.load %arg6[%c1_51, %c0_52, %c0_53, %c0_54] : memref<4x2x16x128xf32, #tpu.memory_space<vmem>>, vector<1x1x16x128xf32>
    %151 = vector.shape_cast %150 : vector<1x1x16x128xf32> to vector<16x128xf32>
    %152 = vector.shape_cast %149 : vector<16x128xf32> to vector<1x1x16x128xf32>
    tpu.vector_store %arg6[%c1_51, %c0_52, %c0_53, %c0_54], %152 {strides = array<i32>} : memref<4x2x16x128xf32, #tpu.memory_space<vmem>>, vector<1x1x16x128xf32>,
    %153 = vector.extract_strided_slice %148 {offsets = [0, 128], sizes = [16, 128], strides = [1, 1]} : vector<16x256xf32> to vector<16x128xf32>
    %c1_55 = arith.constant 1 : index
    %c1_56 = arith.constant 1 : index
    %c0_57 = arith.constant 0 : index
    %c0_58 = arith.constant 0 : index
    %154 = vector.load %arg6[%c1_55, %c1_56, %c0_57, %c0_58] : memref<4x2x16x128xf32, #tpu.memory_space<vmem>>, vector<1x1x16x128xf32>
    %155 = vector.shape_cast %154 : vector<1x1x16x128xf32> to vector<16x128xf32>
    %156 = vector.shape_cast %153 : vector<16x128xf32> to vector<1x1x16x128xf32>
    tpu.vector_store %arg6[%c1_55, %c1_56, %c0_57, %c0_58], %156 {strides = array<i32>} : memref<4x2x16x128xf32, #tpu.memory_space<vmem>>, vector<1x1x16x128xf32>,
    %157 = vector.extract_strided_slice %148 {offsets = [0, 255], sizes = [16, 1], strides = [1, 1]} : vector<16x256xf32> to vector<16x1xf32>
    %158 = vector.extract_strided_slice %148 {offsets = [0, 0], sizes = [16, 255], strides = [1, 1]} : vector<16x256xf32> to vector<16x255xf32>
    %159 = tpu.concatenate %157, %158 in 1 : vector<16x1xf32>, vector<16x255xf32> -> vector<16x256xf32>
    %c1_i32_59 = arith.constant 1 : i32
    %160 = vector.broadcast %c1_i32_59 : i32 to vector<1x256xi32>
    %161 = arith.cmpi sge, %21, %160 : vector<1x256xi32>
    %cst_60 = arith.constant 0.000000e+00 : f32
    %162 = vector.shape_cast %161 : vector<1x256xi1> to vector<1x256xi1>
    %163 = vector.broadcast %162 : vector<1x256xi1> to vector<16x256xi1>
    %164 = vector.broadcast %cst_60 : f32 to vector<16x256xf32>
    %165 = arith.select %163, %159, %164 : vector<16x256xi1>, vector<16x256xf32>
    %166 = vector.extract_strided_slice %148 {offsets = [0, 1], sizes = [16, 255], strides = [1, 1]} : vector<16x256xf32> to vector<16x255xf32>
    %167 = vector.extract_strided_slice %148 {offsets = [0, 0], sizes = [16, 1], strides = [1, 1]} : vector<16x256xf32> to vector<16x1xf32>
    %168 = tpu.concatenate %166, %167 in 1 : vector<16x255xf32>, vector<16x1xf32> -> vector<16x256xf32>
    %c127_i32_61 = arith.constant 127 : i32
    %169 = vector.broadcast %c127_i32_61 : i32 to vector<1x256xi32>
    %170 = arith.cmpi slt, %21, %169 : vector<1x256xi32>
    %cst_62 = arith.constant 0.000000e+00 : f32
    %171 = vector.shape_cast %170 : vector<1x256xi1> to vector<1x256xi1>
    %172 = vector.broadcast %171 : vector<1x256xi1> to vector<16x256xi1>
    %173 = vector.broadcast %cst_62 : f32 to vector<16x256xf32>
    %174 = arith.select %172, %168, %173 : vector<16x256xi1>, vector<16x256xf32>
    %175 = tpu.concatenate %165, %148, %174, %22 in 0 : vector<16x256xf32>, vector<16x256xf32>, vector<16x256xf32>, vector<8x256xf32> -> vector<56x256xf32>
    %176 = arith.truncf %175 : vector<56x256xf32> to vector<56x256xbf16>
    %c2 = arith.constant 2 : index
    %c0_63 = arith.constant 0 : index
    %c0_64 = arith.constant 0 : index
    %177 = vector.load %arg4[%c2, %c0_63, %c0_64] : memref<4x32x56xbf16, #tpu.memory_space<vmem>>, vector<1x32x56xbf16>
    %178 = vector.shape_cast %177 : vector<1x32x56xbf16> to vector<32x56xbf16>
    %cst_65 = arith.constant dense<0.000000e+00> : vector<32x256xf32>
    %179 = tpu.matmul %178, %176, %cst_65 {dimension_numbers = #tpu.dot_dimension_numbers<[1], [0], [0], [1], [0, 0, 1, 1], [], []>} : vector<32x56xbf16>, vector<56x256xbf16>, vector<32x256xf32> -> vector<32x256xf32>
    %180 = vector.extract_strided_slice %179 {offsets = [0, 0], sizes = [16, 256], strides = [1, 1]} : vector<32x256xf32> to vector<16x256xf32>
    %181 = math.tanh %180 : vector<16x256xf32>
    %182 = vector.extract_strided_slice %179 {offsets = [16, 0], sizes = [16, 256], strides = [1, 1]} : vector<32x256xf32> to vector<16x256xf32>
    %183 = arith.negf %182 : vector<16x256xf32>
    %184 = math.exp %183 : vector<16x256xf32>
    %cst_66 = arith.constant 1.000000e+00 : f32
    %185 = vector.broadcast %cst_66 : f32 to vector<16x256xf32>
    %186 = arith.addf %185, %184 : vector<16x256xf32>
    %187 = arith.divf %185, %186 : vector<16x256xf32>
    %188 = arith.mulf %181, %187 : vector<16x256xf32>
    %189 = tpu.concatenate %188, %22 in 0 : vector<16x256xf32>, vector<8x256xf32> -> vector<24x256xf32>
    %190 = arith.truncf %189 : vector<24x256xf32> to vector<24x256xbf16>
    %c2_67 = arith.constant 2 : index
    %c0_68 = arith.constant 0 : index
    %c0_69 = arith.constant 0 : index
    %191 = vector.load %arg5[%c2_67, %c0_68, %c0_69] : memref<4x16x24xbf16, #tpu.memory_space<vmem>>, vector<1x16x24xbf16>
    %192 = vector.shape_cast %191 : vector<1x16x24xbf16> to vector<16x24xbf16>
    %cst_70 = arith.constant dense<0.000000e+00> : vector<16x256xf32>
    %193 = tpu.matmul %192, %190, %cst_70 {dimension_numbers = #tpu.dot_dimension_numbers<[1], [0], [0], [1], [0, 0, 1, 1], [], []>} : vector<16x24xbf16>, vector<24x256xbf16>, vector<16x256xf32> -> vector<16x256xf32>
    %194 = arith.addf %193, %148 : vector<16x256xf32>
    %195 = vector.extract_strided_slice %194 {offsets = [0, 0], sizes = [16, 128], strides = [1, 1]} : vector<16x256xf32> to vector<16x128xf32>
    %c2_71 = arith.constant 2 : index
    %c0_72 = arith.constant 0 : index
    %c0_73 = arith.constant 0 : index
    %c0_74 = arith.constant 0 : index
    %196 = vector.load %arg6[%c2_71, %c0_72, %c0_73, %c0_74] : memref<4x2x16x128xf32, #tpu.memory_space<vmem>>, vector<1x1x16x128xf32>
    %197 = vector.shape_cast %196 : vector<1x1x16x128xf32> to vector<16x128xf32>
    %198 = vector.shape_cast %195 : vector<16x128xf32> to vector<1x1x16x128xf32>
    tpu.vector_store %arg6[%c2_71, %c0_72, %c0_73, %c0_74], %198 {strides = array<i32>} : memref<4x2x16x128xf32, #tpu.memory_space<vmem>>, vector<1x1x16x128xf32>,
    %199 = vector.extract_strided_slice %194 {offsets = [0, 128], sizes = [16, 128], strides = [1, 1]} : vector<16x256xf32> to vector<16x128xf32>
    %c2_75 = arith.constant 2 : index
    %c1_76 = arith.constant 1 : index
    %c0_77 = arith.constant 0 : index
    %c0_78 = arith.constant 0 : index
    %200 = vector.load %arg6[%c2_75, %c1_76, %c0_77, %c0_78] : memref<4x2x16x128xf32, #tpu.memory_space<vmem>>, vector<1x1x16x128xf32>
    %201 = vector.shape_cast %200 : vector<1x1x16x128xf32> to vector<16x128xf32>
    %202 = vector.shape_cast %199 : vector<16x128xf32> to vector<1x1x16x128xf32>
    tpu.vector_store %arg6[%c2_75, %c1_76, %c0_77, %c0_78], %202 {strides = array<i32>} : memref<4x2x16x128xf32, #tpu.memory_space<vmem>>, vector<1x1x16x128xf32>,
    %203 = vector.extract_strided_slice %194 {offsets = [0, 254], sizes = [16, 2], strides = [1, 1]} : vector<16x256xf32> to vector<16x2xf32>
    %204 = vector.extract_strided_slice %194 {offsets = [0, 0], sizes = [16, 254], strides = [1, 1]} : vector<16x256xf32> to vector<16x254xf32>
    %205 = tpu.concatenate %203, %204 in 1 : vector<16x2xf32>, vector<16x254xf32> -> vector<16x256xf32>
    %c2_i32_79 = arith.constant 2 : i32
    %206 = vector.broadcast %c2_i32_79 : i32 to vector<1x256xi32>
    %207 = arith.cmpi sge, %21, %206 : vector<1x256xi32>
    %cst_80 = arith.constant 0.000000e+00 : f32
    %208 = vector.shape_cast %207 : vector<1x256xi1> to vector<1x256xi1>
    %209 = vector.broadcast %208 : vector<1x256xi1> to vector<16x256xi1>
    %210 = vector.broadcast %cst_80 : f32 to vector<16x256xf32>
    %211 = arith.select %209, %205, %210 : vector<16x256xi1>, vector<16x256xf32>
    %212 = vector.extract_strided_slice %194 {offsets = [0, 2], sizes = [16, 254], strides = [1, 1]} : vector<16x256xf32> to vector<16x254xf32>
    %213 = vector.extract_strided_slice %194 {offsets = [0, 0], sizes = [16, 2], strides = [1, 1]} : vector<16x256xf32> to vector<16x2xf32>
    %214 = tpu.concatenate %212, %213 in 1 : vector<16x254xf32>, vector<16x2xf32> -> vector<16x256xf32>
    %c126_i32_81 = arith.constant 126 : i32
    %215 = vector.broadcast %c126_i32_81 : i32 to vector<1x256xi32>
    %216 = arith.cmpi slt, %21, %215 : vector<1x256xi32>
    %cst_82 = arith.constant 0.000000e+00 : f32
    %217 = vector.shape_cast %216 : vector<1x256xi1> to vector<1x256xi1>
    %218 = vector.broadcast %217 : vector<1x256xi1> to vector<16x256xi1>
    %219 = vector.broadcast %cst_82 : f32 to vector<16x256xf32>
    %220 = arith.select %218, %214, %219 : vector<16x256xi1>, vector<16x256xf32>
    %221 = tpu.concatenate %211, %194, %220, %22 in 0 : vector<16x256xf32>, vector<16x256xf32>, vector<16x256xf32>, vector<8x256xf32> -> vector<56x256xf32>
    %222 = arith.truncf %221 : vector<56x256xf32> to vector<56x256xbf16>
    %c3 = arith.constant 3 : index
    %c0_83 = arith.constant 0 : index
    %c0_84 = arith.constant 0 : index
    %223 = vector.load %arg4[%c3, %c0_83, %c0_84] : memref<4x32x56xbf16, #tpu.memory_space<vmem>>, vector<1x32x56xbf16>
    %224 = vector.shape_cast %223 : vector<1x32x56xbf16> to vector<32x56xbf16>
    %cst_85 = arith.constant dense<0.000000e+00> : vector<32x256xf32>
    %225 = tpu.matmul %224, %222, %cst_85 {dimension_numbers = #tpu.dot_dimension_numbers<[1], [0], [0], [1], [0, 0, 1, 1], [], []>} : vector<32x56xbf16>, vector<56x256xbf16>, vector<32x256xf32> -> vector<32x256xf32>
    %226 = vector.extract_strided_slice %225 {offsets = [0, 0], sizes = [16, 256], strides = [1, 1]} : vector<32x256xf32> to vector<16x256xf32>
    %227 = math.tanh %226 : vector<16x256xf32>
    %228 = vector.extract_strided_slice %225 {offsets = [16, 0], sizes = [16, 256], strides = [1, 1]} : vector<32x256xf32> to vector<16x256xf32>
    %229 = arith.negf %228 : vector<16x256xf32>
    %230 = math.exp %229 : vector<16x256xf32>
    %cst_86 = arith.constant 1.000000e+00 : f32
    %231 = vector.broadcast %cst_86 : f32 to vector<16x256xf32>
    %232 = arith.addf %231, %230 : vector<16x256xf32>
    %233 = arith.divf %231, %232 : vector<16x256xf32>
    %234 = arith.mulf %227, %233 : vector<16x256xf32>
    %235 = tpu.concatenate %234, %22 in 0 : vector<16x256xf32>, vector<8x256xf32> -> vector<24x256xf32>
    %236 = arith.truncf %235 : vector<24x256xf32> to vector<24x256xbf16>
    %c3_87 = arith.constant 3 : index
    %c0_88 = arith.constant 0 : index
    %c0_89 = arith.constant 0 : index
    %237 = vector.load %arg5[%c3_87, %c0_88, %c0_89] : memref<4x16x24xbf16, #tpu.memory_space<vmem>>, vector<1x16x24xbf16>
    %238 = vector.shape_cast %237 : vector<1x16x24xbf16> to vector<16x24xbf16>
    %cst_90 = arith.constant dense<0.000000e+00> : vector<16x256xf32>
    %239 = tpu.matmul %238, %236, %cst_90 {dimension_numbers = #tpu.dot_dimension_numbers<[1], [0], [0], [1], [0, 0, 1, 1], [], []>} : vector<16x24xbf16>, vector<24x256xbf16>, vector<16x256xf32> -> vector<16x256xf32>
    %240 = arith.addf %239, %194 : vector<16x256xf32>
    %241 = vector.extract_strided_slice %240 {offsets = [0, 0], sizes = [16, 128], strides = [1, 1]} : vector<16x256xf32> to vector<16x128xf32>
    %c3_91 = arith.constant 3 : index
    %c0_92 = arith.constant 0 : index
    %c0_93 = arith.constant 0 : index
    %c0_94 = arith.constant 0 : index
    %242 = vector.load %arg6[%c3_91, %c0_92, %c0_93, %c0_94] : memref<4x2x16x128xf32, #tpu.memory_space<vmem>>, vector<1x1x16x128xf32>
    %243 = vector.shape_cast %242 : vector<1x1x16x128xf32> to vector<16x128xf32>
    %244 = vector.shape_cast %241 : vector<16x128xf32> to vector<1x1x16x128xf32>
    tpu.vector_store %arg6[%c3_91, %c0_92, %c0_93, %c0_94], %244 {strides = array<i32>} : memref<4x2x16x128xf32, #tpu.memory_space<vmem>>, vector<1x1x16x128xf32>,
    %245 = vector.extract_strided_slice %240 {offsets = [0, 128], sizes = [16, 128], strides = [1, 1]} : vector<16x256xf32> to vector<16x128xf32>
    %c3_95 = arith.constant 3 : index
    %c1_96 = arith.constant 1 : index
    %c0_97 = arith.constant 0 : index
    %c0_98 = arith.constant 0 : index
    %246 = vector.load %arg6[%c3_95, %c1_96, %c0_97, %c0_98] : memref<4x2x16x128xf32, #tpu.memory_space<vmem>>, vector<1x1x16x128xf32>
    %247 = vector.shape_cast %246 : vector<1x1x16x128xf32> to vector<16x128xf32>
    %248 = vector.shape_cast %245 : vector<16x128xf32> to vector<1x1x16x128xf32>
    tpu.vector_store %arg6[%c3_95, %c1_96, %c0_97, %c0_98], %248 {strides = array<i32>} : memref<4x2x16x128xf32, #tpu.memory_space<vmem>>, vector<1x1x16x128xf32>,
    return
  }
  func.func @transform_0(%arg0: i32) -> (i32, i32, i32) {
    %c0_i32 = arith.constant 0 : i32
    %c0_i32_0 = arith.constant 0 : i32
    %c0_i32_1 = arith.constant 0 : i32
    return %arg0, %c0_i32, %c0_i32_0 : i32, i32, i32
  }
  func.func @transform_1(%arg0: i32) -> (i32, i32, i32) {
    %c0_i32 = arith.constant 0 : i32
    %c0_i32_0 = arith.constant 0 : i32
    %c0_i32_1 = arith.constant 0 : i32
    %c0_i32_2 = arith.constant 0 : i32
    return %c0_i32, %c0_i32_0, %c0_i32_1 : i32, i32, i32
  }
  func.func @transform_2(%arg0: i32) -> (i32, i32) {
    %c0_i32 = arith.constant 0 : i32
    %c0_i32_0 = arith.constant 0 : i32
    %c0_i32_1 = arith.constant 0 : i32
    return %c0_i32, %c0_i32_0 : i32, i32
  }
  func.func @transform_3(%arg0: i32) -> (i32, i32, i32) {
    %c0_i32 = arith.constant 0 : i32
    %c0_i32_0 = arith.constant 0 : i32
    %c0_i32_1 = arith.constant 0 : i32
    %c0_i32_2 = arith.constant 0 : i32
    return %c0_i32, %c0_i32_0, %c0_i32_1 : i32, i32, i32
  }
  func.func @transform_4(%arg0: i32) -> (i32, i32, i32) {
    %c0_i32 = arith.constant 0 : i32
    %c0_i32_0 = arith.constant 0 : i32
    %c0_i32_1 = arith.constant 0 : i32
    %c0_i32_2 = arith.constant 0 : i32
    return %c0_i32, %c0_i32_0, %c0_i32_1 : i32, i32, i32
  }
  func.func @transform_5(%arg0: i32) -> (i32, i32, i32, i32) {
    %c0_i32 = arith.constant 0 : i32
    %c0_i32_0 = arith.constant 0 : i32
    %c0_i32_1 = arith.constant 0 : i32
    %c0_i32_2 = arith.constant 0 : i32
    return %c0_i32, %arg0, %c0_i32_0, %c0_i32_1 : i32, i32, i32, i32
  }
}

</mosaic_0001>

<llo_original>
// kernel: wavenet_convs_forward.1
$region0: #{wavenet_convs_forward.1}
  #allocation0 [shape = 'u32[]', space=smem, size = 0x4, offset = 0x4, fixed_abs, tag = 'smem constant byte address 0x4 - core index']
  #allocation1 [shape = 'u32[72,128]{1,0:T(1,128)}', space=vmem, size = 0x9000, scoped, tag = 'internal scratch']
  %s0 = inlined_call_operand.vmem [shape: f32[2,4,128], index: 0, kind: input, shape index: {}]
  %s1 = inlined_call_operand.vmem [shape: bf16[3,16,4], index: 1, kind: input, shape index: {}]
  %s2 = inlined_call_operand.vmem [shape: f32[16,1], index: 2, kind: input, shape index: {}]
  %s3 = inlined_call_operand.hbm [shape: bf16[4,32,56], index: 3, kind: input, shape index: {}]
  %s4 = inlined_call_operand.vmem [shape: bf16[4,16,24], index: 4, kind: input, shape index: {}]
  %s5 = inlined_call_operand.vmem [shape: f32[4,2,16,128], index: 5, kind: output, shape index: {}]
  %s6 = sld [smem:[#allocation0]]
  $region34: #{wavenet_convs_forward.1} parent=0
    _
  %s8 = ssub.s32 1, %s6
  %s9 = scalar_select 0, %s8, %s6
  $region1: #{wavenet_convs_forward.1} parent=0
    #allocation2 [shape = 'u8[32768]{0}', space=vmem, size = 0x8000, scoped, tag = 'input window, operand 3, single buffered']
    #allocation3 [shape = 's32[1]{0}', space=sflag, size = 0x4, scoped, tag = 'scoped memory for wavenet_convs_forward.1']
    %10 = vsyncpa [#allocation3], 0
    // Predicated region
    $region2: #{wavenet_convs_forward.1} parent=1 // pred_check
      _
    $region3: #{wavenet_convs_forward.1} parent=1 // pred_check_branch
      %12 = sbr.rel (0) target = $region5
    $region4: #{wavenet_convs_forward.1} parent=1 // pred_region
      _
    $region5: #{wavenet_convs_forward.1} parent=1 // pred_fallthru
      _
    // Predicated region
    $region6: #{wavenet_convs_forward.1} parent=1 // pred_check
      _
    $region7: #{wavenet_convs_forward.1} parent=1 // pred_check_branch
      %14 = sbr.rel (0) target = $region9
    $region8: #{wavenet_convs_forward.1} parent=1 // pred_region
      _
    $region9: #{wavenet_convs_forward.1} parent=1 // pred_fallthru
      _
    // Predicated region
    $region10: #{wavenet_convs_forward.1} parent=1 // pred_check
      _
    $region11: #{wavenet_convs_forward.1} parent=1 // pred_check_branch
      %16 = sbr.rel (0) target = $region13
    $region12: #{wavenet_convs_forward.1} parent=1 // pred_region
      _
    $region13: #{wavenet_convs_forward.1} parent=1 // pred_fallthru
      _
    // Predicated region
    $region14: #{wavenet_convs_forward.1} parent=1 // pred_check
      _
    $region15: #{wavenet_convs_forward.1} parent=1 // pred_check_branch
      %18 = sbr.rel (0) target = $region17
    $region16: #{wavenet_convs_forward.1} parent=1 // pred_region
      %20 = vsyncadd [#allocation3], 0
      %s21 = sshll.u32 %s3, 4
      %s22 = int_to_ptr.hbm [resolvable:$true] %s21
      %s23 = sshll.u32 [#allocation2], 4
      %s24 = int_to_ptr.vmem [resolvable:$true] %s23
      %29 = dma.hbm_to_vmem [thread:$0]  %s22, 1024, %s24, [#allocation3], 64, 64, 4
    $region17: #{wavenet_convs_forward.1} parent=1 // pred_fallthru
      _
    // Predicated region
    $region18: #{wavenet_convs_forward.1} parent=1 // pred_check
      _
    $region19: #{wavenet_convs_forward.1} parent=1 // pred_check_branch
      %31 = sbr.rel (0) target = $region21
    $region20: #{wavenet_convs_forward.1} parent=1 // pred_region
      _
    $region21: #{wavenet_convs_forward.1} parent=1 // pred_fallthru
      _
    // Predicated region
    $region22: #{wavenet_convs_forward.1} parent=1 // pred_check
      _
    $region23: #{wavenet_convs_forward.1} parent=1 // pred_check_branch
      %33 = sbr.rel (0) target = $region25
    $region24: #{wavenet_convs_forward.1} parent=1 // pred_region
      %35 = dma.done [#allocation3], 1024
    $region25: #{wavenet_convs_forward.1} parent=1 // pred_fallthru
      _
    %v37 = vld [vmem:[%s0] sm:$0xf]
    %s38 = scalar_lea.vmem %s0, 4
    %v39 = vld [vmem:[%s38] sm:$0xf]
    %v40 = vlaneseq
    %v41 = vand.u32 %v40, 127
    %v42 = vadd.s32 %v41, 128
    %vm43 = vcmp.lt.s32.totalorder %v41, 0
    %v44 = vsub.s32 0, %v41
    %v45 = vsel %vm43, %v44, %v41
    %v46 = vshrl.u32 %v45, 7
    %v47 = vand.u32 %v45, 127
    %v48 = vsub.s32 0, %v47
    %v49 = vsel %vm43, %v48, %v47
    %vm50 = vcmp.lt.s32.totalorder %v42, 0
    %v51 = vsub.s32 0, %v42
    %v52 = vsel %vm50, %v51, %v42
    %v53 = vshrl.u32 %v52, 7
    %v54 = vand.u32 %v52, 127
    %v55 = vsub.s32 0, %v54
    %v56 = vsel %vm50, %v55, %v54
    %vm57 = vcmp.ne.s32.totalorder %v49, 0
    %vm58 = vcmp.ne.s32.totalorder %v56, 0
    %vm59 = vcmp.lt.s32.totalorder %v49, 0
    %vm60 = vcmp.lt.s32.totalorder %v56, 0
    %vm61 = vmand %vm59, %vm57
    %vm62 = vmand %vm60, %vm58
    %v63 = vadd.s32 %v49, 128
    %v64 = vadd.s32 %v56, 128
    %v65 = vsel %vm61, %v63, %v49
    %v66 = vsel %vm62, %v64, %v56
    %v67 = vld [vmem:[%s1] sm:$0xf]
    %v68 = vld [vmem:[%s1 + $0x4] sm:$0xf]
    %v69 = vld [vmem:[%s1 + $0x8] sm:$0xf]
    %v70 = vld [vmem:[%s1 + $0xc] sm:$0xf]
    %v71 = vld [vmem:[%s1 + $0x10] sm:$0xf]
    %v72 = vld [vmem:[%s1 + $0x14] sm:$0xf]
    %74 = vrot.lane.b32.xlu0 %v39, 1
    %v75 = vpop.permute.xlu0 %74
    %78 = vrot.lane.b32.xlu0 %v37, 1
    %v79 = vpop.permute.xlu0 %78
    %vm80 = vcmask 7168
    %v81 = vsel %vm80, %v79, %v75
    %v84 = vsel %vm80, %v75, %v79
    %vm85 = vcmp.ge.s32.totalorder %v65, 1
    %vm86 = vcmp.ge.s32.totalorder %v66, 1
    %v87 = vsel %vm85, 1, 0
    %v88 = vsel %vm86, 1, 0
    %vm89 = vcmp.eq.s32.totalorder %v87, 1
    %vm90 = vcmp.eq.s32.totalorder %v88, 1
    %v91 = vsel %vm89, %v84, 0.0
    %v92 = vsel %vm90, %v81, 0.0
    %v93 = vpack.c.bf16 %v91, %v91
    %v94 = vpack.c.bf16 %v92, %v92
    %v95 = vpack.c.bf16 %v37, %v37
    %v96 = vpack.c.bf16 %v39, %v39
    %v99 = vunpack.c.l.b16 %v69
    %v100 = vunpack.c.l.b16 %v70
    %v101 = vpack.c.b16 %v100, %v99
    %vm102 = vcmask 31744
    %v104 = vsel %vm102, %v101, 0
    %vm106 = vcmask 1041408
    %v108 = vsel %vm106, %v95, 0
    %v111 = vsel %vm106, %v96, 0
    %113 = vmatpush.bf16.msra.mxu0 0
    %114 = vmatpush.bf16.msra.mxu0 0
    %115 = vmatpush.bf16.msra.mxu0 0
    %116 = vmatpush.bf16.msra.mxu0 0
    %117 = vmatpush.bf16.msra.mxu0 0
    %118 = vmatpush.bf16.msra.mxu0 0
    %119 = vmatpush.bf16.msra.mxu0 0
    %120 = vmatpush.bf16.msra.mxu0 %v108
    %121 = vmatmul.bf16.gmra.mxu0 %v104
    %v122 = vpop.f32.mrf.mxu0
    %v123 = vadd.f32 0.0, %v122
    %v124 = vpop.f32.mrf.mxu0
    %v125 = vadd.f32 0.0, %v124
    %126 = vdwg.mxu0
    %127 = vmatpush.bf16.msra.mxu0 0
    %128 = vmatpush.bf16.msra.mxu0 0
    %129 = vmatpush.bf16.msra.mxu0 0
    %130 = vmatpush.bf16.msra.mxu0 0
    %131 = vmatpush.bf16.msra.mxu0 0
    %132 = vmatpush.bf16.msra.mxu0 0
    %133 = vmatpush.bf16.msra.mxu0 0
    %134 = vmatpush.bf16.msra.mxu0 %v111
    %135 = vmatmul.bf16.gmra.mxu0 %v104
    %v136 = vpop.f32.mrf.mxu0
    %v137 = vadd.f32 0.0, %v136
    %v138 = vpop.f32.mrf.mxu0
    %v139 = vadd.f32 0.0, %v138
    %140 = vdwg.mxu0
    %v143 = vunpack.c.l.b16 %v67
    %v144 = vunpack.c.l.b16 %v68
    %v145 = vpack.c.b16 %v144, %v143
    %v147 = vsel %vm102, %v145, 0
    %v150 = vsel %vm106, %v93, 0
    %v153 = vsel %vm106, %v94, 0
    %155 = vmatpush.bf16.msra.mxu0 0
    %156 = vmatpush.bf16.msra.mxu0 0
    %157 = vmatpush.bf16.msra.mxu0 0
    %158 = vmatpush.bf16.msra.mxu0 0
    %159 = vmatpush.bf16.msra.mxu0 0
    %160 = vmatpush.bf16.msra.mxu0 0
    %161 = vmatpush.bf16.msra.mxu0 0
    %162 = vmatpush.bf16.msra.mxu0 %v150
    %163 = vmatmul.bf16.gmra.mxu0 %v147
    %v164 = vpop.f32.mrf.mxu0
    %v165 = vadd.f32 %v123, %v164
    %v166 = vpop.f32.mrf.mxu0
    %v167 = vadd.f32 %v125, %v166
    %168 = vdwg.mxu0
    %169 = vmatpush.bf16.msra.mxu0 0
    %170 = vmatpush.bf16.msra.mxu0 0
    %171 = vmatpush.bf16.msra.mxu0 0
    %172 = vmatpush.bf16.msra.mxu0 0
    %173 = vmatpush.bf16.msra.mxu0 0
    %174 = vmatpush.bf16.msra.mxu0 0
    %175 = vmatpush.bf16.msra.mxu0 0
    %176 = vmatpush.bf16.msra.mxu0 %v153
    %177 = vmatmul.bf16.gmra.mxu0 %v147
    %v178 = vpop.f32.mrf.mxu0
    %v179 = vadd.f32 %v137, %v178
    %v180 = vpop.f32.mrf.mxu0
    %v181 = vadd.f32 %v139, %v180
    %182 = vdwg.mxu0
    %183 = vrot.lane.b32.xlu0 %v37, 127
    %v184 = vpop.permute.xlu0 %183
    %185 = vrot.lane.b32.xlu0 %v39, 127
    %v186 = vpop.permute.xlu0 %185
    %vm187 = vcmask 1039360
    %v188 = vsel %vm187, %v184, %v186
    %v192 = vsel %vm187, %v186, %v184
    %vm193 = vcmp.lt.s32.totalorder %v65, 127
    %vm194 = vcmp.lt.s32.totalorder %v66, 127
    %v195 = vsel %vm193, 1, 0
    %v196 = vsel %vm194, 1, 0
    %vm197 = vcmp.eq.s32.totalorder %v195, 1
    %vm198 = vcmp.eq.s32.totalorder %v196, 1
    %v199 = vsel %vm197, %v188, 0.0
    %v200 = vsel %vm198, %v192, 0.0
    %v201 = vpack.c.bf16 %v199, %v199
    %v202 = vpack.c.bf16 %v200, %v200
    %v205 = vunpack.c.l.b16 %v71
    %v206 = vunpack.c.l.b16 %v72
    %v207 = vpack.c.b16 %v206, %v205
    %v209 = vsel %vm102, %v207, 0
    %v212 = vsel %vm106, %v201, 0
    %v215 = vsel %vm106, %v202, 0
    %217 = vmatpush.bf16.msra.mxu0 0
    %218 = vmatpush.bf16.msra.mxu0 0
    %219 = vmatpush.bf16.msra.mxu0 0
    %220 = vmatpush.bf16.msra.mxu0 0
    %221 = vmatpush.bf16.msra.mxu0 0
    %222 = vmatpush.bf16.msra.mxu0 0
    %223 = vmatpush.bf16.msra.mxu0 0
    %224 = vmatpush.bf16.msra.mxu0 %v212
    %225 = vmatmul.bf16.gmra.mxu0 %v209
    %v226 = vpop.f32.mrf.mxu0
    %v227 = vadd.f32 0.0, %v226
    %v228 = vpop.f32.mrf.mxu0
    %v229 = vadd.f32 0.0, %v228
    %230 = vdwg.mxu0
    %231 = vmatpush.bf16.msra.mxu0 0
    %232 = vmatpush.bf16.msra.mxu0 0
    %233 = vmatpush.bf16.msra.mxu0 0
    %234 = vmatpush.bf16.msra.mxu0 0
    %235 = vmatpush.bf16.msra.mxu0 0
    %236 = vmatpush.bf16.msra.mxu0 0
    %237 = vmatpush.bf16.msra.mxu0 0
    %238 = vmatpush.bf16.msra.mxu0 %v215
    %239 = vmatmul.bf16.gmra.mxu0 %v209
    %v240 = vpop.f32.mrf.mxu0
    %v241 = vadd.f32 0.0, %v240
    %v242 = vpop.f32.mrf.mxu0
    %v243 = vadd.f32 0.0, %v242
    %244 = vdwg.mxu0
    %v245 = vadd.f32 %v165, %v227
    %v246 = vadd.f32 %v179, %v241
    %v247 = vadd.f32 %v167, %v229
    %v248 = vadd.f32 %v181, %v243
    %v249 = vld [vmem:[%s2] sm:$0xff]
    %v250 = vld [vmem:[%s2 + $0x8] sm:$0xff]
    %252 = vset.pattern.permute.xlu0 0
    %253 = vperm.xlu0 %252, %v249
    %v254 = vpop.permute.xlu0 %253
    %257 = vset.pattern.permute.xlu0 0
    %258 = vperm.xlu0 %257, %v250
    %v259 = vpop.permute.xlu0 %258
    %v261 = vadd.f32 %v245, %v254
    %v262 = vadd.f32 %v246, %v254
    %v263 = vadd.f32 %v247, %v259
    %v264 = vadd.f32 %v248, %v259
    %v265 = vxor.u32 %v261, 2147483648
    %v266 = vxor.u32 %v262, 2147483648
    %v267 = vxor.u32 %v263, 2147483648
    %v268 = vxor.u32 %v264, 2147483648
    %v269 = vmul.f32 %v265, 1.442695
    %v270 = vpow.pop %v269
    %v271 = vmul.f32 %v266, 1.442695
    %v272 = vpow.pop %v271
    %v273 = vmul.f32 %v267, 1.442695
    %v274 = vpow.pop %v273
    %v275 = vmul.f32 %v268, 1.442695
    %v276 = vpow.pop %v275
    %v277 = vadd.f32 %v270, 1.0
    %v278 = vadd.f32 %v272, 1.0
    %v279 = vadd.f32 %v274, 1.0
    %v280 = vadd.f32 %v276, 1.0
    %v281 = vrcp.pop %v277
    %v282 = vmul.f32 %v277, %v281
    %v283 = vsub.f32 1.0, %v282
    %v284 = vmul.f32 %v281, %v283
    %v285 = vadd.f32 %v281, %v284
    %vm286 = vweird.f32 %v277
    %vm287 = vweird.f32 %v281
    %vm288 = vmor %vm286, %vm287
    %v289 = vsel %vm288, %v281, %v285
    %v290 = vand.u32 2147483647, %v277
    %vm291 = vcmp.eq.f32.partialorder %v290, 8.507059e+37
    %v292 = vand.u32 %v277, 2147483648
    %v293 = vor.u32 1.1754944e-38, %v292
    %v294 = vsel %vm291, %v293, %v289
    %v295 = vmul.f32 1.0, %v294
    %v296 = vrcp.pop %v278
    %v297 = vmul.f32 %v278, %v296
    %v298 = vsub.f32 1.0, %v297
    %v299 = vmul.f32 %v296, %v298
    %v300 = vadd.f32 %v296, %v299
    %vm301 = vweird.f32 %v278
    %vm302 = vweird.f32 %v296
    %vm303 = vmor %vm301, %vm302
    %v304 = vsel %vm303, %v296, %v300
    %v305 = vand.u32 2147483647, %v278
    %vm306 = vcmp.eq.f32.partialorder %v305, 8.507059e+37
    %v307 = vand.u32 %v278, 2147483648
    %v308 = vor.u32 1.1754944e-38, %v307
    %v309 = vsel %vm306, %v308, %v304
    %v310 = vmul.f32 1.0, %v309
    %v311 = vrcp.pop %v279
    %v312 = vmul.f32 %v279, %v311
    %v313 = vsub.f32 1.0, %v312
    %v314 = vmul.f32 %v311, %v313
    %v315 = vadd.f32 %v311, %v314
    %vm316 = vweird.f32 %v279
    %vm317 = vweird.f32 %v311
    %vm318 = vmor %vm316, %vm317
    %v319 = vsel %vm318, %v311, %v315
    %v320 = vand.u32 2147483647, %v279
    %vm321 = vcmp.eq.f32.partialorder %v320, 8.507059e+37
    %v322 = vand.u32 %v279, 2147483648
    %v323 = vor.u32 1.1754944e-38, %v322
    %v324 = vsel %vm321, %v323, %v319
    %v325 = vmul.f32 1.0, %v324
    %v326 = vrcp.pop %v280
    %v327 = vmul.f32 %v280, %v326
    %v328 = vsub.f32 1.0, %v327
    %v329 = vmul.f32 %v326, %v328
    %v330 = vadd.f32 %v326, %v329
    %vm331 = vweird.f32 %v280
    %vm332 = vweird.f32 %v326
    %vm333 = vmor %vm331, %vm332
    %v334 = vsel %vm333, %v326, %v330
    %v335 = vand.u32 2147483647, %v280
    %vm336 = vcmp.eq.f32.partialorder %v335, 8.507059e+37
    %v337 = vand.u32 %v280, 2147483648
    %v338 = vor.u32 1.1754944e-38, %v337
    %v339 = vsel %vm336, %v338, %v334
    %v340 = vmul.f32 1.0, %v339
    %v341 = vmul.f32 %v261, %v295
    %v342 = vmul.f32 %v262, %v310
    %v343 = vmul.f32 %v263, %v325
    %v344 = vmul.f32 %v264, %v340
    %347 = vrot.lane.b32.xlu0 %v342, 1
    %v348 = vpop.permute.xlu0 %347
    %349 = vrot.lane.b32.xlu0 %v344, 1
    %v350 = vpop.permute.xlu0 %349
    %355 = vrot.lane.b32.xlu0 %v341, 1
    %v356 = vpop.permute.xlu0 %355
    %357 = vrot.lane.b32.xlu0 %v343, 1
    %v358 = vpop.permute.xlu0 %357
    %v359 = vsel %vm80, %v356, %v348
    %v360 = vsel %vm80, %v358, %v350
    %v365 = vsel %vm80, %v348, %v356
    %v366 = vsel %vm80, %v350, %v358
    %v367 = vsel %vm89, %v365, 0.0
    %v368 = vsel %vm90, %v359, 0.0
    %v369 = vsel %vm89, %v366, 0.0
    %v370 = vsel %vm90, %v360, 0.0
    %371 = vrot.lane.b32.xlu0 %v341, 127
    %v372 = vpop.permute.xlu0 %371
    %373 = vrot.lane.b32.xlu0 %v342, 127
    %v374 = vpop.permute.xlu0 %373
    %375 = vrot.lane.b32.xlu0 %v343, 127
    %v376 = vpop.permute.xlu0 %375
    %377 = vrot.lane.b32.xlu0 %v344, 127
    %v378 = vpop.permute.xlu0 %377
    %v379 = vsel %vm187, %v372, %v374
    %v380 = vsel %vm187, %v376, %v378
    %v387 = vsel %vm187, %v374, %v372
    %v388 = vsel %vm187, %v378, %v376
    %v389 = vsel %vm197, %v379, 0.0
    %v390 = vsel %vm198, %v387, 0.0
    %v391 = vsel %vm197, %v380, 0.0
    %v392 = vsel %vm198, %v388, 0.0
    %v393 = vpack.c.bf16 %v369, %v367
    %v394 = vpack.c.bf16 %v370, %v368
    %v395 = vpack.c.bf16 %v343, %v341
    %v396 = vpack.c.bf16 %v344, %v342
    %v397 = vpack.c.bf16 %v391, %v389
    %v398 = vpack.c.bf16 %v392, %v390
    %v399 = vpack.c.bf16 1.0, 1.0
    %v400 = vld [vmem:[#allocation2] sm:$0xf]
    %v401 = vld [vmem:[#allocation2 + $0x4] sm:$0xf]
    %v402 = vld [vmem:[#allocation2 + $0x8] sm:$0xf]
    %v403 = vld [vmem:[#allocation2 + $0xc] sm:$0xf]
    %v408 = vunpack.c.l.b16 %v400
    %v409 = vunpack.c.l.b16 %v401
    %v410 = vunpack.c.l.b16 %v402
    %v411 = vunpack.c.l.b16 %v403
    %v412 = vpack.c.b16 %v409, %v408
    %v413 = vpack.c.b16 %v411, %v410
    %vm414 = vcmask 457728
    %v416 = vsel %vm414, %v412, 0
    %v419 = vsel %vm414, %v413, 0
    %vm421 = vcmask 1043456
    %v423 = vsel %vm421, %v399, 0
    %425 = vmatpush.bf16.msra.mxu0 0
    %426 = vmatpush.bf16.msra.mxu0 0
    %427 = vmatpush.bf16.msra.mxu0 0
    %428 = vmatpush.bf16.msra.mxu0 0
    %429 = vmatpush.bf16.msra.mxu0 %v423
    %430 = vmatpush.bf16.msra.mxu0 %v397
    %431 = vmatpush.bf16.msra.mxu0 %v395
    %432 = vmatpush.bf16.msra.mxu0 %v393
    %433 = vmatmul.bf16.gmra.mxu0 %v416
    %v434 = vpop.f32.mrf.mxu0
    %v435 = vadd.f32 0.0, %v434
    %v436 = vpop.f32.mrf.mxu0
    %v437 = vadd.f32 0.0, %v436
    %438 = vmatmul.bf16.gmra.mxu0 %v419
    %v439 = vpop.f32.mrf.mxu0
    %v440 = vadd.f32 0.0, %v439
    %v441 = vpop.f32.mrf.mxu0
    %v442 = vadd.f32 0.0, %v441
    %443 = vdwg.mxu0
    %444 = vmatpush.bf16.msra.mxu0 0
    %445 = vmatpush.bf16.msra.mxu0 0
    %446 = vmatpush.bf16.msra.mxu0 0
    %447 = vmatpush.bf16.msra.mxu0 0
    %448 = vmatpush.bf16.msra.mxu0 %v423
    %449 = vmatpush.bf16.msra.mxu0 %v398
    %450 = vmatpush.bf16.msra.mxu0 %v396
    %451 = vmatpush.bf16.msra.mxu0 %v394
    %452 = vmatmul.bf16.gmra.mxu0 %v416
    %v453 = vpop.f32.mrf.mxu0
    %v454 = vadd.f32 0.0, %v453
    %v455 = vpop.f32.mrf.mxu0
    %v456 = vadd.f32 0.0, %v455
    %457 = vmatmul.bf16.gmra.mxu0 %v419
    %v458 = vpop.f32.mrf.mxu0
    %v459 = vadd.f32 0.0, %v458
    %v460 = vpop.f32.mrf.mxu0
    %v461 = vadd.f32 0.0, %v460
    %462 = vdwg.mxu0
    %v463 = vtanh.pop %v435
    %v464 = vtanh.pop %v454
    %v465 = vtanh.pop %v437
    %v466 = vtanh.pop %v456
    %v467 = vxor.u32 %v440, 2147483648
    %v468 = vxor.u32 %v459, 2147483648
    %v469 = vxor.u32 %v442, 2147483648
    %v470 = vxor.u32 %v461, 2147483648
    %v471 = vmul.f32 %v467, 1.442695
    %v472 = vpow.pop %v471
    %v473 = vmul.f32 %v468, 1.442695
    %v474 = vpow.pop %v473
    %v475 = vmul.f32 %v469, 1.442695
    %v476 = vpow.pop %v475
    %v477 = vmul.f32 %v470, 1.442695
    %v478 = vpow.pop %v477
    %v479 = vadd.f32 %v472, 1.0
    %v480 = vadd.f32 %v474, 1.0
    %v481 = vadd.f32 %v476, 1.0
    %v482 = vadd.f32 %v478, 1.0
    %v483 = vrcp.pop %v479
    %v484 = vmul.f32 %v479, %v483
    %v485 = vsub.f32 1.0, %v484
    %v486 = vmul.f32 %v483, %v485
    %v487 = vadd.f32 %v483, %v486
    %vm488 = vweird.f32 %v479
    %vm489 = vweird.f32 %v483
    %vm490 = vmor %vm488, %vm489
    %v491 = vsel %vm490, %v483, %v487
    %v492 = vand.u32 2147483647, %v479
    %vm493 = vcmp.eq.f32.partialorder %v492, 8.507059e+37
    %v494 = vand.u32 %v479, 2147483648
    %v495 = vor.u32 1.1754944e-38, %v494
    %v496 = vsel %vm493, %v495, %v491
    %v497 = vmul.f32 1.0, %v496
    %v498 = vrcp.pop %v480
    %v499 = vmul.f32 %v480, %v498
    %v500 = vsub.f32 1.0, %v499
    %v501 = vmul.f32 %v498, %v500
    %v502 = vadd.f32 %v498, %v501
    %vm503 = vweird.f32 %v480
    %vm504 = vweird.f32 %v498
    %vm505 = vmor %vm503, %vm504
    %v506 = vsel %vm505, %v498, %v502
    %v507 = vand.u32 2147483647, %v480
    %vm508 = vcmp.eq.f32.partialorder %v507, 8.507059e+37
    %v509 = vand.u32 %v480, 2147483648
    %v510 = vor.u32 1.1754944e-38, %v509
    %v511 = vsel %vm508, %v510, %v506
    %v512 = vmul.f32 1.0, %v511
    %v513 = vrcp.pop %v481
    %v514 = vmul.f32 %v481, %v513
    %v515 = vsub.f32 1.0, %v514
    %v516 = vmul.f32 %v513, %v515
    %v517 = vadd.f32 %v513, %v516
    %vm518 = vweird.f32 %v481
    %vm519 = vweird.f32 %v513
    %vm520 = vmor %vm518, %vm519
    %v521 = vsel %vm520, %v513, %v517
    %v522 = vand.u32 2147483647, %v481
    %vm523 = vcmp.eq.f32.partialorder %v522, 8.507059e+37
    %v524 = vand.u32 %v481, 2147483648
    %v525 = vor.u32 1.1754944e-38, %v524
    %v526 = vsel %vm523, %v525, %v521
    %v527 = vmul.f32 1.0, %v526
    %v528 = vrcp.pop %v482
    %v529 = vmul.f32 %v482, %v528
    %v530 = vsub.f32 1.0, %v529
    %v531 = vmul.f32 %v528, %v530
    %v532 = vadd.f32 %v528, %v531
    %vm533 = vweird.f32 %v482
    %vm534 = vweird.f32 %v528
    %vm535 = vmor %vm533, %vm534
    %v536 = vsel %vm535, %v528, %v532
    %v537 = vand.u32 2147483647, %v482
    %vm538 = vcmp.eq.f32.partialorder %v537, 8.507059e+37
    %v539 = vand.u32 %v482, 2147483648
    %v540 = vor.u32 1.1754944e-38, %v539
    %v541 = vsel %vm538, %v540, %v536
    %v542 = vmul.f32 1.0, %v541
    %v543 = vmul.f32 %v463, %v497
    %v544 = vmul.f32 %v464, %v512
    %v545 = vmul.f32 %v465, %v527
    %v546 = vmul.f32 %v466, %v542
    %v547 = vpack.c.bf16 %v545, %v543
    %v548 = vpack.c.bf16 %v546, %v544
    %v549 = vld [vmem:[%s4] sm:$0xf]
    %v550 = vld [vmem:[%s4 + $0x4] sm:$0xf]
    %v553 = vunpack.c.l.b16 %v549
    %v554 = vunpack.c.l.b16 %v550
    %v555 = vpack.c.b16 %v554, %v553
    %vm556 = vcmask 195584
    %v558 = vsel %vm556, %v555, 0
    %560 = vmatpush.bf16.msra.mxu0 0
    %561 = vmatpush.bf16.msra.mxu0 0
    %562 = vmatpush.bf16.msra.mxu0 0
    %563 = vmatpush.bf16.msra.mxu0 0
    %564 = vmatpush.bf16.msra.mxu0 0
    %565 = vmatpush.bf16.msra.mxu0 0
    %566 = vmatpush.bf16.msra.mxu0 %v423
    %567 = vmatpush.bf16.msra.mxu0 %v547
    %568 = vmatmul.bf16.gmra.mxu0 %v558
    %v569 = vpop.f32.mrf.mxu0
    %v570 = vadd.f32 %v341, %v569
    %v571 = vpop.f32.mrf.mxu0
    %v572 = vadd.f32 %v343, %v571
    %573 = vdwg.mxu0
    %574 = vmatpush.bf16.msra.mxu0 0
    %575 = vmatpush.bf16.msra.mxu0 0
    %576 = vmatpush.bf16.msra.mxu0 0
    %577 = vmatpush.bf16.msra.mxu0 0
    %578 = vmatpush.bf16.msra.mxu0 0
    %579 = vmatpush.bf16.msra.mxu0 0
    %580 = vmatpush.bf16.msra.mxu0 %v423
    %581 = vmatpush.bf16.msra.mxu0 %v548
    %582 = vmatmul.bf16.gmra.mxu0 %v558
    %v583 = vpop.f32.mrf.mxu0
    %v584 = vadd.f32 %v342, %v583
    %v585 = vpop.f32.mrf.mxu0
    %v586 = vadd.f32 %v344, %v585
    %587 = vdwg.mxu0
    %588 = vst [vmem:[%s5] sm:$0xff] %v570
    %589 = vst [vmem:[%s5 + $0x8] sm:$0xff] %v572
    %s590 = scalar_lea.vmem %s5, 16
    %591 = vst [vmem:[%s590] sm:$0xff] %v584
    %592 = vst [vmem:[%s590 + $0x8] sm:$0xff] %v586
    %595 = vrot.lane.b32.xlu0 %v584, 2
    %v596 = vpop.permute.xlu0 %595
    %597 = vrot.lane.b32.xlu0 %v586, 2
    %v598 = vpop.permute.xlu0 %597
    %603 = vrot.lane.b32.xlu0 %v570, 2
    %v604 = vpop.permute.xlu0 %603
    %605 = vrot.lane.b32.xlu0 %v572, 2
    %v606 = vpop.permute.xlu0 %605
    %vm607 = vcmask 15360
    %v608 = vsel %vm607, %v604, %v596
    %v609 = vsel %vm607, %v606, %v598
    %v614 = vsel %vm607, %v596, %v604
    %v615 = vsel %vm607, %v598, %v606
    %vm616 = vcmp.ge.s32.totalorder %v65, 2
    %vm617 = vcmp.ge.s32.totalorder %v66, 2
    %v618 = vsel %vm616, 1, 0
    %v619 = vsel %vm617, 1, 0
    %vm620 = vcmp.eq.s32.totalorder %v618, 1
    %vm621 = vcmp.eq.s32.totalorder %v619, 1
    %v622 = vsel %vm620, %v614, 0.0
    %v623 = vsel %vm621, %v608, 0.0
    %v624 = vsel %vm620, %v615, 0.0
    %v625 = vsel %vm621, %v609, 0.0
    %626 = vrot.lane.b32.xlu0 %v570, 126
    %v627 = vpop.permute.xlu0 %626
    %628 = vrot.lane.b32.xlu0 %v584, 126
    %v629 = vpop.permute.xlu0 %628
    %630 = vrot.lane.b32.xlu0 %v572, 126
    %v631 = vpop.permute.xlu0 %630
    %632 = vrot.lane.b32.xlu0 %v586, 126
    %v633 = vpop.permute.xlu0 %632
    %vm634 = vcmask 1031168
    %v635 = vsel %vm634, %v627, %v629
    %v636 = vsel %vm634, %v631, %v633
    %v643 = vsel %vm634, %v629, %v627
    %v644 = vsel %vm634, %v633, %v631
    %vm645 = vcmp.lt.s32.totalorder %v65, 126
    %vm646 = vcmp.lt.s32.totalorder %v66, 126
    %v647 = vsel %vm645, 1, 0
    %v648 = vsel %vm646, 1, 0
    %vm649 = vcmp.eq.s32.totalorder %v647, 1
    %vm650 = vcmp.eq.s32.totalorder %v648, 1
    %v651 = vsel %vm649, %v635, 0.0
    %v652 = vsel %vm650, %v643, 0.0
    %v653 = vsel %vm649, %v636, 0.0
    %v654 = vsel %vm650, %v644, 0.0
    %v655 = vpack.c.bf16 %v624, %v622
    %v656 = vpack.c.bf16 %v625, %v623
    %v657 = vpack.c.bf16 %v572, %v570
    %v658 = vpack.c.bf16 %v586, %v584
    %v659 = vpack.c.bf16 %v653, %v651
    %v660 = vpack.c.bf16 %v654, %v652
    %s661 = scalar_lea.vmem [#allocation2], 16
    %v662 = vld [vmem:[%s661] sm:$0xf]
    %v663 = vld [vmem:[%s661 + $0x4] sm:$0xf]
    %v664 = vld [vmem:[%s661 + $0x8] sm:$0xf]
    %v665 = vld [vmem:[%s661 + $0xc] sm:$0xf]
    %v670 = vunpack.c.l.b16 %v662
    %v671 = vunpack.c.l.b16 %v663
    %v672 = vunpack.c.l.b16 %v664
    %v673 = vunpack.c.l.b16 %v665
    %v674 = vpack.c.b16 %v671, %v670
    %v675 = vpack.c.b16 %v673, %v672
    %v677 = vsel %vm414, %v674, 0
    %v680 = vsel %vm414, %v675, 0
    %682 = vmatpush.bf16.msra.mxu0 0
    %683 = vmatpush.bf16.msra.mxu0 0
    %684 = vmatpush.bf16.msra.mxu0 0
    %685 = vmatpush.bf16.msra.mxu0 0
    %686 = vmatpush.bf16.msra.mxu0 %v423
    %687 = vmatpush.bf16.msra.mxu0 %v659
    %688 = vmatpush.bf16.msra.mxu0 %v657
    %689 = vmatpush.bf16.msra.mxu0 %v655
    %690 = vmatmul.bf16.gmra.mxu0 %v677
    %v691 = vpop.f32.mrf.mxu0
    %v692 = vadd.f32 0.0, %v691
    %v693 = vpop.f32.mrf.mxu0
    %v694 = vadd.f32 0.0, %v693
    %695 = vmatmul.bf16.gmra.mxu0 %v680
    %v696 = vpop.f32.mrf.mxu0
    %v697 = vadd.f32 0.0, %v696
    %v698 = vpop.f32.mrf.mxu0
    %v699 = vadd.f32 0.0, %v698
    %700 = vdwg.mxu0
    %701 = vmatpush.bf16.msra.mxu0 0
    %702 = vmatpush.bf16.msra.mxu0 0
    %703 = vmatpush.bf16.msra.mxu0 0
    %704 = vmatpush.bf16.msra.mxu0 0
    %705 = vmatpush.bf16.msra.mxu0 %v423
    %706 = vmatpush.bf16.msra.mxu0 %v660
    %707 = vmatpush.bf16.msra.mxu0 %v658
    %708 = vmatpush.bf16.msra.mxu0 %v656
    %709 = vmatmul.bf16.gmra.mxu0 %v677
    %v710 = vpop.f32.mrf.mxu0
    %v711 = vadd.f32 0.0, %v710
    %v712 = vpop.f32.mrf.mxu0
    %v713 = vadd.f32 0.0, %v712
    %714 = vmatmul.bf16.gmra.mxu0 %v680
    %v715 = vpop.f32.mrf.mxu0
    %v716 = vadd.f32 0.0, %v715
    %v717 = vpop.f32.mrf.mxu0
    %v718 = vadd.f32 0.0, %v717
    %719 = vdwg.mxu0
    %v720 = vtanh.pop %v692
    %v721 = vtanh.pop %v711
    %v722 = vtanh.pop %v694
    %v723 = vtanh.pop %v713
    %v724 = vxor.u32 %v697, 2147483648
    %v725 = vxor.u32 %v716, 2147483648
    %v726 = vxor.u32 %v699, 2147483648
    %v727 = vxor.u32 %v718, 2147483648
    %v728 = vmul.f32 %v724, 1.442695
    %v729 = vpow.pop %v728
    %v730 = vmul.f32 %v725, 1.442695
    %v731 = vpow.pop %v730
    %v732 = vmul.f32 %v726, 1.442695
    %v733 = vpow.pop %v732
    %v734 = vmul.f32 %v727, 1.442695
    %v735 = vpow.pop %v734
    %v736 = vadd.f32 %v729, 1.0
    %v737 = vadd.f32 %v731, 1.0
    %v738 = vadd.f32 %v733, 1.0
    %v739 = vadd.f32 %v735, 1.0
    %v740 = vrcp.pop %v736
    %v741 = vmul.f32 %v736, %v740
    %v742 = vsub.f32 1.0, %v741
    %v743 = vmul.f32 %v740, %v742
    %v744 = vadd.f32 %v740, %v743
    %vm745 = vweird.f32 %v736
    %vm746 = vweird.f32 %v740
    %vm747 = vmor %vm745, %vm746
    %v748 = vsel %vm747, %v740, %v744
    %v749 = vand.u32 2147483647, %v736
    %vm750 = vcmp.eq.f32.partialorder %v749, 8.507059e+37
    %v751 = vand.u32 %v736, 2147483648
    %v752 = vor.u32 1.1754944e-38, %v751
    %v753 = vsel %vm750, %v752, %v748
    %v754 = vmul.f32 1.0, %v753
    %v755 = vrcp.pop %v737
    %v756 = vmul.f32 %v737, %v755
    %v757 = vsub.f32 1.0, %v756
    %v758 = vmul.f32 %v755, %v757
    %v759 = vadd.f32 %v755, %v758
    %vm760 = vweird.f32 %v737
    %vm761 = vweird.f32 %v755
    %vm762 = vmor %vm760, %vm761
    %v763 = vsel %vm762, %v755, %v759
    %v764 = vand.u32 2147483647, %v737
    %vm765 = vcmp.eq.f32.partialorder %v764, 8.507059e+37
    %v766 = vand.u32 %v737, 2147483648
    %v767 = vor.u32 1.1754944e-38, %v766
    %v768 = vsel %vm765, %v767, %v763
    %v769 = vmul.f32 1.0, %v768
    %v770 = vrcp.pop %v738
    %v771 = vmul.f32 %v738, %v770
    %v772 = vsub.f32 1.0, %v771
    %v773 = vmul.f32 %v770, %v772
    %v774 = vadd.f32 %v770, %v773
    %vm775 = vweird.f32 %v738
    %vm776 = vweird.f32 %v770
    %vm777 = vmor %vm775, %vm776
    %v778 = vsel %vm777, %v770, %v774
    %v779 = vand.u32 2147483647, %v738
    %vm780 = vcmp.eq.f32.partialorder %v779, 8.507059e+37
    %v781 = vand.u32 %v738, 2147483648
    %v782 = vor.u32 1.1754944e-38, %v781
    %v783 = vsel %vm780, %v782, %v778
    %v784 = vmul.f32 1.0, %v783
    %v785 = vrcp.pop %v739
    %v786 = vmul.f32 %v739, %v785
    %v787 = vsub.f32 1.0, %v786
    %v788 = vmul.f32 %v785, %v787
    %v789 = vadd.f32 %v785, %v788
    %vm790 = vweird.f32 %v739
    %vm791 = vweird.f32 %v785
    %vm792 = vmor %vm790, %vm791
    %v793 = vsel %vm792, %v785, %v789
    %v794 = vand.u32 2147483647, %v739
    %vm795 = vcmp.eq.f32.partialorder %v794, 8.507059e+37
    %v796 = vand.u32 %v739, 2147483648
    %v797 = vor.u32 1.1754944e-38, %v796
    %v798 = vsel %vm795, %v797, %v793
    %v799 = vmul.f32 1.0, %v798
    %v800 = vmul.f32 %v720, %v754
    %v801 = vmul.f32 %v721, %v769
    %v802 = vmul.f32 %v722, %v784
    %v803 = vmul.f32 %v723, %v799
    %v804 = vpack.c.bf16 %v802, %v800
    %v805 = vpack.c.bf16 %v803, %v801
    %s806 = scalar_lea.vmem %s4, 8
    %v807 = vld [vmem:[%s806] sm:$0xf]
    %v808 = vld [vmem:[%s806 + $0x4] sm:$0xf]
    %v811 = vunpack.c.l.b16 %v807
    %v812 = vunpack.c.l.b16 %v808
    %v813 = vpack.c.b16 %v812, %v811
    %v815 = vsel %vm556, %v813, 0
    %817 = vmatpush.bf16.msra.mxu0 0
    %818 = vmatpush.bf16.msra.mxu0 0
    %819 = vmatpush.bf16.msra.mxu0 0
    %820 = vmatpush.bf16.msra.mxu0 0
    %821 = vmatpush.bf16.msra.mxu0 0
    %822 = vmatpush.bf16.msra.mxu0 0
    %823 = vmatpush.bf16.msra.mxu0 %v423
    %824 = vmatpush.bf16.msra.mxu0 %v804
    %825 = vmatmul.bf16.gmra.mxu0 %v815
    %v826 = vpop.f32.mrf.mxu0
    %v827 = vadd.f32 %v570, %v826
    %v828 = vpop.f32.mrf.mxu0
    %v829 = vadd.f32 %v572, %v828
    %830 = vdwg.mxu0
    %831 = vmatpush.bf16.msra.mxu0 0
    %832 = vmatpush.bf16.msra.mxu0 0
    %833 = vmatpush.bf16.msra.mxu0 0
    %834 = vmatpush.bf16.msra.mxu0 0
    %835 = vmatpush.bf16.msra.mxu0 0
    %836 = vmatpush.bf16.msra.mxu0 0
    %837 = vmatpush.bf16.msra.mxu0 %v423
    %838 = vmatpush.bf16.msra.mxu0 %v805
    %839 = vmatmul.bf16.gmra.mxu0 %v815
    %v840 = vpop.f32.mrf.mxu0
    %v841 = vadd.f32 %v584, %v840
    %v842 = vpop.f32.mrf.mxu0
    %v843 = vadd.f32 %v586, %v842
    %844 = vdwg.mxu0
    %s845 = scalar_lea.vmem %s5, 32
    %846 = vst [vmem:[%s845] sm:$0xff] %v827
    %847 = vst [vmem:[%s845 + $0x8] sm:$0xff] %v829
    %s848 = scalar_lea.vmem %s5, 48
    %849 = vst [vmem:[%s848] sm:$0xff] %v841
    %850 = vst [vmem:[%s848 + $0x8] sm:$0xff] %v843
    %853 = vrot.lane.b32.xlu0 %v841, 1
    %v854 = vpop.permute.xlu0 %853
    %855 = vrot.lane.b32.xlu0 %v843, 1
    %v856 = vpop.permute.xlu0 %855
    %861 = vrot.lane.b32.xlu0 %v827, 1
    %v862 = vpop.permute.xlu0 %861
    %863 = vrot.lane.b32.xlu0 %v829, 1
    %v864 = vpop.permute.xlu0 %863
    %v865 = vsel %vm80, %v862, %v854
    %v866 = vsel %vm80, %v864, %v856
    %v871 = vsel %vm80, %v854, %v862
    %v872 = vsel %vm80, %v856, %v864
    %v873 = vsel %vm89, %v871, 0.0
    %v874 = vsel %vm90, %v865, 0.0
    %v875 = vsel %vm89, %v872, 0.0
    %v876 = vsel %vm90, %v866, 0.0
    %877 = vrot.lane.b32.xlu0 %v827, 127
    %v878 = vpop.permute.xlu0 %877
    %879 = vrot.lane.b32.xlu0 %v841, 127
    %v880 = vpop.permute.xlu0 %879
    %881 = vrot.lane.b32.xlu0 %v829, 127
    %v882 = vpop.permute.xlu0 %881
    %883 = vrot.lane.b32.xlu0 %v843, 127
    %v884 = vpop.permute.xlu0 %883
    %v885 = vsel %vm187, %v878, %v880
    %v886 = vsel %vm187, %v882, %v884
    %v893 = vsel %vm187, %v880, %v878
    %v894 = vsel %vm187, %v884, %v882
    %v895 = vsel %vm197, %v885, 0.0
    %v896 = vsel %vm198, %v893, 0.0
    %v897 = vsel %vm197, %v886, 0.0
    %v898 = vsel %vm198, %v894, 0.0
    %v899 = vpack.c.bf16 %v875, %v873
    %v900 = vpack.c.bf16 %v876, %v874
    %v901 = vpack.c.bf16 %v829, %v827
    %v902 = vpack.c.bf16 %v843, %v841
    %v903 = vpack.c.bf16 %v897, %v895
    %v904 = vpack.c.bf16 %v898, %v896
    %s905 = scalar_lea.vmem [#allocation2], 32
    %v906 = vld [vmem:[%s905] sm:$0xf]
    %v907 = vld [vmem:[%s905 + $0x4] sm:$0xf]
    %v908 = vld [vmem:[%s905 + $0x8] sm:$0xf]
    %v909 = vld [vmem:[%s905 + $0xc] sm:$0xf]
    %v914 = vunpack.c.l.b16 %v906
    %v915 = vunpack.c.l.b16 %v907
    %v916 = vunpack.c.l.b16 %v908
    %v917 = vunpack.c.l.b16 %v909
    %v918 = vpack.c.b16 %v915, %v914
    %v919 = vpack.c.b16 %v917, %v916
    %v921 = vsel %vm414, %v918, 0
    %v924 = vsel %vm414, %v919, 0
    %926 = vmatpush.bf16.msra.mxu0 0
    %927 = vmatpush.bf16.msra.mxu0 0
    %928 = vmatpush.bf16.msra.mxu0 0
    %929 = vmatpush.bf16.msra.mxu0 0
    %930 = vmatpush.bf16.msra.mxu0 %v423
    %931 = vmatpush.bf16.msra.mxu0 %v903
    %932 = vmatpush.bf16.msra.mxu0 %v901
    %933 = vmatpush.bf16.msra.mxu0 %v899
    %934 = vmatmul.bf16.gmra.mxu0 %v921
    %v935 = vpop.f32.mrf.mxu0
    %v936 = vadd.f32 0.0, %v935
    %v937 = vpop.f32.mrf.mxu0
    %v938 = vadd.f32 0.0, %v937
    %939 = vmatmul.bf16.gmra.mxu0 %v924
    %v940 = vpop.f32.mrf.mxu0
    %v941 = vadd.f32 0.0, %v940
    %v942 = vpop.f32.mrf.mxu0
    %v943 = vadd.f32 0.0, %v942
    %944 = vdwg.mxu0
    %945 = vmatpush.bf16.msra.mxu0 0
    %946 = vmatpush.bf16.msra.mxu0 0
    %947 = vmatpush.bf16.msra.mxu0 0
    %948 = vmatpush.bf16.msra.mxu0 0
    %949 = vmatpush.bf16.msra.mxu0 %v423
    %950 = vmatpush.bf16.msra.mxu0 %v904
    %951 = vmatpush.bf16.msra.mxu0 %v902
    %952 = vmatpush.bf16.msra.mxu0 %v900
    %953 = vmatmul.bf16.gmra.mxu0 %v921
    %v954 = vpop.f32.mrf.mxu0
    %v955 = vadd.f32 0.0, %v954
    %v956 = vpop.f32.mrf.mxu0
    %v957 = vadd.f32 0.0, %v956
    %958 = vmatmul.bf16.gmra.mxu0 %v924
    %v959 = vpop.f32.mrf.mxu0
    %v960 = vadd.f32 0.0, %v959
    %v961 = vpop.f32.mrf.mxu0
    %v962 = vadd.f32 0.0, %v961
    %963 = vdwg.mxu0
    %v964 = vtanh.pop %v936
    %v965 = vtanh.pop %v955
    %v966 = vtanh.pop %v938
    %v967 = vtanh.pop %v957
    %v968 = vxor.u32 %v941, 2147483648
    %v969 = vxor.u32 %v960, 2147483648
    %v970 = vxor.u32 %v943, 2147483648
    %v971 = vxor.u32 %v962, 2147483648
    %v972 = vmul.f32 %v968, 1.442695
    %v973 = vpow.pop %v972
    %v974 = vmul.f32 %v969, 1.442695
    %v975 = vpow.pop %v974
    %v976 = vmul.f32 %v970, 1.442695
    %v977 = vpow.pop %v976
    %v978 = vmul.f32 %v971, 1.442695
    %v979 = vpow.pop %v978
    %v980 = vadd.f32 %v973, 1.0
    %v981 = vadd.f32 %v975, 1.0
    %v982 = vadd.f32 %v977, 1.0
    %v983 = vadd.f32 %v979, 1.0
    %v984 = vrcp.pop %v980
    %v985 = vmul.f32 %v980, %v984
    %v986 = vsub.f32 1.0, %v985
    %v987 = vmul.f32 %v984, %v986
    %v988 = vadd.f32 %v984, %v987
    %vm989 = vweird.f32 %v980
    %vm990 = vweird.f32 %v984
    %vm991 = vmor %vm989, %vm990
    %v992 = vsel %vm991, %v984, %v988
    %v993 = vand.u32 2147483647, %v980
    %vm994 = vcmp.eq.f32.partialorder %v993, 8.507059e+37
    %v995 = vand.u32 %v980, 2147483648
    %v996 = vor.u32 1.1754944e-38, %v995
    %v997 = vsel %vm994, %v996, %v992
    %v998 = vmul.f32 1.0, %v997
    %v999 = vrcp.pop %v981
    %v1000 = vmul.f32 %v981, %v999
    %v1001 = vsub.f32 1.0, %v1000
    %v1002 = vmul.f32 %v999, %v1001
    %v1003 = vadd.f32 %v999, %v1002
    %vm1004 = vweird.f32 %v981
    %vm1005 = vweird.f32 %v999
    %vm1006 = vmor %vm1004, %vm1005
    %v1007 = vsel %vm1006, %v999, %v1003
    %v1008 = vand.u32 2147483647, %v981
    %vm1009 = vcmp.eq.f32.partialorder %v1008, 8.507059e+37
    %v1010 = vand.u32 %v981, 2147483648
    %v1011 = vor.u32 1.1754944e-38, %v1010
    %v1012 = vsel %vm1009, %v1011, %v1007
    %v1013 = vmul.f32 1.0, %v1012
    %v1014 = vrcp.pop %v982
    %v1015 = vmul.f32 %v982, %v1014
    %v1016 = vsub.f32 1.0, %v1015
    %v1017 = vmul.f32 %v1014, %v1016
    %v1018 = vadd.f32 %v1014, %v1017
    %vm1019 = vweird.f32 %v982
    %vm1020 = vweird.f32 %v1014
    %vm1021 = vmor %vm1019, %vm1020
    %v1022 = vsel %vm1021, %v1014, %v1018
    %v1023 = vand.u32 2147483647, %v982
    %vm1024 = vcmp.eq.f32.partialorder %v1023, 8.507059e+37
    %v1025 = vand.u32 %v982, 2147483648
    %v1026 = vor.u32 1.1754944e-38, %v1025
    %v1027 = vsel %vm1024, %v1026, %v1022
    %v1028 = vmul.f32 1.0, %v1027
    %v1029 = vrcp.pop %v983
    %v1030 = vmul.f32 %v983, %v1029
    %v1031 = vsub.f32 1.0, %v1030
    %v1032 = vmul.f32 %v1029, %v1031
    %v1033 = vadd.f32 %v1029, %v1032
    %vm1034 = vweird.f32 %v983
    %vm1035 = vweird.f32 %v1029
    %vm1036 = vmor %vm1034, %vm1035
    %v1037 = vsel %vm1036, %v1029, %v1033
    %v1038 = vand.u32 2147483647, %v983
    %vm1039 = vcmp.eq.f32.partialorder %v1038, 8.507059e+37
    %v1040 = vand.u32 %v983, 2147483648
    %v1041 = vor.u32 1.1754944e-38, %v1040
    %v1042 = vsel %vm1039, %v1041, %v1037
    %v1043 = vmul.f32 1.0, %v1042
    %v1044 = vmul.f32 %v964, %v998
    %v1045 = vmul.f32 %v965, %v1013
    %v1046 = vmul.f32 %v966, %v1028
    %v1047 = vmul.f32 %v967, %v1043
    %v1048 = vpack.c.bf16 %v1046, %v1044
    %v1049 = vpack.c.bf16 %v1047, %v1045
    %s1050 = scalar_lea.vmem %s4, 16
    %v1051 = vld [vmem:[%s1050] sm:$0xf]
    %v1052 = vld [vmem:[%s1050 + $0x4] sm:$0xf]
    %v1055 = vunpack.c.l.b16 %v1051
    %v1056 = vunpack.c.l.b16 %v1052
    %v1057 = vpack.c.b16 %v1056, %v1055
    %v1059 = vsel %vm556, %v1057, 0
    %1061 = vmatpush.bf16.msra.mxu0 0
    %1062 = vmatpush.bf16.msra.mxu0 0
    %1063 = vmatpush.bf16.msra.mxu0 0
    %1064 = vmatpush.bf16.msra.mxu0 0
    %1065 = vmatpush.bf16.msra.mxu0 0
    %1066 = vmatpush.bf16.msra.mxu0 0
    %1067 = vmatpush.bf16.msra.mxu0 %v423
    %1068 = vmatpush.bf16.msra.mxu0 %v1048
    %1069 = vmatmul.bf16.gmra.mxu0 %v1059
    %v1070 = vpop.f32.mrf.mxu0
    %v1071 = vadd.f32 %v827, %v1070
    %v1072 = vpop.f32.mrf.mxu0
    %v1073 = vadd.f32 %v829, %v1072
    %1074 = vdwg.mxu0
    %1075 = vmatpush.bf16.msra.mxu0 0
    %1076 = vmatpush.bf16.msra.mxu0 0
    %1077 = vmatpush.bf16.msra.mxu0 0
    %1078 = vmatpush.bf16.msra.mxu0 0
    %1079 = vmatpush.bf16.msra.mxu0 0
    %1080 = vmatpush.bf16.msra.mxu0 0
    %1081 = vmatpush.bf16.msra.mxu0 %v423
    %1082 = vmatpush.bf16.msra.mxu0 %v1049
    %1083 = vmatmul.bf16.gmra.mxu0 %v1059
    %v1084 = vpop.f32.mrf.mxu0
    %v1085 = vadd.f32 %v841, %v1084
    %v1086 = vpop.f32.mrf.mxu0
    %v1087 = vadd.f32 %v843, %v1086
    %1088 = vdwg.mxu0
    %s1089 = scalar_lea.vmem %s5, 64
    %1090 = vst [vmem:[%s1089] sm:$0xff] %v1071
    %1091 = vst [vmem:[%s1089 + $0x8] sm:$0xff] %v1073
    %s1092 = scalar_lea.vmem %s5, 80
    %1093 = vst [vmem:[%s1092] sm:$0xff] %v1085
    %1094 = vst [vmem:[%s1092 + $0x8] sm:$0xff] %v1087
    %1097 = vrot.lane.b32.xlu0 %v1085, 2
    %v1098 = vpop.permute.xlu0 %1097
    %1099 = vrot.lane.b32.xlu0 %v1087, 2
    %v1100 = vpop.permute.xlu0 %1099
    %1105 = vrot.lane.b32.xlu0 %v1071, 2
    %v1106 = vpop.permute.xlu0 %1105
    %1107 = vrot.lane.b32.xlu0 %v1073, 2
    %v1108 = vpop.permute.xlu0 %1107
    %v1109 = vsel %vm607, %v1106, %v1098
    %v1110 = vsel %vm607, %v1108, %v1100
    %v1115 = vsel %vm607, %v1098, %v1106
    %v1116 = vsel %vm607, %v1100, %v1108
    %v1117 = vsel %vm620, %v1115, 0.0
    %v1118 = vsel %vm621, %v1109, 0.0
    %v1119 = vsel %vm620, %v1116, 0.0
    %v1120 = vsel %vm621, %v1110, 0.0
    %1121 = vrot.lane.b32.xlu0 %v1071, 126
    %v1122 = vpop.permute.xlu0 %1121
    %1123 = vrot.lane.b32.xlu0 %v1085, 126
    %v1124 = vpop.permute.xlu0 %1123
    %1125 = vrot.lane.b32.xlu0 %v1073, 126
    %v1126 = vpop.permute.xlu0 %1125
    %1127 = vrot.lane.b32.xlu0 %v1087, 126
    %v1128 = vpop.permute.xlu0 %1127
    %v1129 = vsel %vm634, %v1122, %v1124
    %v1130 = vsel %vm634, %v1126, %v1128
    %v1137 = vsel %vm634, %v1124, %v1122
    %v1138 = vsel %vm634, %v1128, %v1126
    %v1139 = vsel %vm649, %v1129, 0.0
    %v1140 = vsel %vm650, %v1137, 0.0
    %v1141 = vsel %vm649, %v1130, 0.0
    %v1142 = vsel %vm650, %v1138, 0.0
    %v1143 = vpack.c.bf16 %v1119, %v1117
    %v1144 = vpack.c.bf16 %v1120, %v1118
    %v1145 = vpack.c.bf16 %v1073, %v1071
    %v1146 = vpack.c.bf16 %v1087, %v1085
    %v1147 = vpack.c.bf16 %v1141, %v1139
    %v1148 = vpack.c.bf16 %v1142, %v1140
    %s1149 = scalar_lea.vmem [#allocation2], 48
    %v1150 = vld [vmem:[%s1149] sm:$0xf]
    %v1151 = vld [vmem:[%s1149 + $0x4] sm:$0xf]
    %v1152 = vld [vmem:[%s1149 + $0x8] sm:$0xf]
    %v1153 = vld [vmem:[%s1149 + $0xc] sm:$0xf]
    %v1158 = vunpack.c.l.b16 %v1150
    %v1159 = vunpack.c.l.b16 %v1151
    %v1160 = vunpack.c.l.b16 %v1152
    %v1161 = vunpack.c.l.b16 %v1153
    %v1162 = vpack.c.b16 %v1159, %v1158
    %v1163 = vpack.c.b16 %v1161, %v1160
    %v1165 = vsel %vm414, %v1162, 0
    %v1168 = vsel %vm414, %v1163, 0
    %1170 = vmatpush.bf16.msra.mxu0 0
    %1171 = vmatpush.bf16.msra.mxu0 0
    %1172 = vmatpush.bf16.msra.mxu0 0
    %1173 = vmatpush.bf16.msra.mxu0 0
    %1174 = vmatpush.bf16.msra.mxu0 %v423
    %1175 = vmatpush.bf16.msra.mxu0 %v1147
    %1176 = vmatpush.bf16.msra.mxu0 %v1145
    %1177 = vmatpush.bf16.msra.mxu0 %v1143
    %1178 = vmatmul.bf16.gmra.mxu0 %v1165
    %v1179 = vpop.f32.mrf.mxu0
    %v1180 = vadd.f32 0.0, %v1179
    %v1181 = vpop.f32.mrf.mxu0
    %v1182 = vadd.f32 0.0, %v1181
    %1183 = vmatmul.bf16.gmra.mxu0 %v1168
    %v1184 = vpop.f32.mrf.mxu0
    %v1185 = vadd.f32 0.0, %v1184
    %v1186 = vpop.f32.mrf.mxu0
    %v1187 = vadd.f32 0.0, %v1186
    %1188 = vdwg.mxu0
    %1189 = vmatpush.bf16.msra.mxu0 0
    %1190 = vmatpush.bf16.msra.mxu0 0
    %1191 = vmatpush.bf16.msra.mxu0 0
    %1192 = vmatpush.bf16.msra.mxu0 0
    %1193 = vmatpush.bf16.msra.mxu0 %v423
    %1194 = vmatpush.bf16.msra.mxu0 %v1148
    %1195 = vmatpush.bf16.msra.mxu0 %v1146
    %1196 = vmatpush.bf16.msra.mxu0 %v1144
    %1197 = vmatmul.bf16.gmra.mxu0 %v1165
    %v1198 = vpop.f32.mrf.mxu0
    %v1199 = vadd.f32 0.0, %v1198
    %v1200 = vpop.f32.mrf.mxu0
    %v1201 = vadd.f32 0.0, %v1200
    %1202 = vmatmul.bf16.gmra.mxu0 %v1168
    %v1203 = vpop.f32.mrf.mxu0
    %v1204 = vadd.f32 0.0, %v1203
    %v1205 = vpop.f32.mrf.mxu0
    %v1206 = vadd.f32 0.0, %v1205
    %1207 = vdwg.mxu0
    %v1208 = vtanh.pop %v1180
    %v1209 = vtanh.pop %v1199
    %v1210 = vtanh.pop %v1182
    %v1211 = vtanh.pop %v1201
    %v1212 = vxor.u32 %v1185, 2147483648
    %v1213 = vxor.u32 %v1204, 2147483648
    %v1214 = vxor.u32 %v1187, 2147483648
    %v1215 = vxor.u32 %v1206, 2147483648
    %v1216 = vmul.f32 %v1212, 1.442695
    %v1217 = vpow.pop %v1216
    %v1218 = vmul.f32 %v1213, 1.442695
    %v1219 = vpow.pop %v1218
    %v1220 = vmul.f32 %v1214, 1.442695
    %v1221 = vpow.pop %v1220
    %v1222 = vmul.f32 %v1215, 1.442695
    %v1223 = vpow.pop %v1222
    %v1224 = vadd.f32 %v1217, 1.0
    %v1225 = vadd.f32 %v1219, 1.0
    %v1226 = vadd.f32 %v1221, 1.0
    %v1227 = vadd.f32 %v1223, 1.0
    %v1228 = vrcp.pop %v1224
    %v1229 = vmul.f32 %v1224, %v1228
    %v1230 = vsub.f32 1.0, %v1229
    %v1231 = vmul.f32 %v1228, %v1230
    %v1232 = vadd.f32 %v1228, %v1231
    %vm1233 = vweird.f32 %v1224
    %vm1234 = vweird.f32 %v1228
    %vm1235 = vmor %vm1233, %vm1234
    %v1236 = vsel %vm1235, %v1228, %v1232
    %v1237 = vand.u32 2147483647, %v1224
    %vm1238 = vcmp.eq.f32.partialorder %v1237, 8.507059e+37
    %v1239 = vand.u32 %v1224, 2147483648
    %v1240 = vor.u32 1.1754944e-38, %v1239
    %v1241 = vsel %vm1238, %v1240, %v1236
    %v1242 = vmul.f32 1.0, %v1241
    %v1243 = vrcp.pop %v1225
    %v1244 = vmul.f32 %v1225, %v1243
    %v1245 = vsub.f32 1.0, %v1244
    %v1246 = vmul.f32 %v1243, %v1245
    %v1247 = vadd.f32 %v1243, %v1246
    %vm1248 = vweird.f32 %v1225
    %vm1249 = vweird.f32 %v1243
    %vm1250 = vmor %vm1248, %vm1249
    %v1251 = vsel %vm1250, %v1243, %v1247
    %v1252 = vand.u32 2147483647, %v1225
    %vm1253 = vcmp.eq.f32.partialorder %v1252, 8.507059e+37
    %v1254 = vand.u32 %v1225, 2147483648
    %v1255 = vor.u32 1.1754944e-38, %v1254
    %v1256 = vsel %vm1253, %v1255, %v1251
    %v1257 = vmul.f32 1.0, %v1256
    %v1258 = vrcp.pop %v1226
    %v1259 = vmul.f32 %v1226, %v1258
    %v1260 = vsub.f32 1.0, %v1259
    %v1261 = vmul.f32 %v1258, %v1260
    %v1262 = vadd.f32 %v1258, %v1261
    %vm1263 = vweird.f32 %v1226
    %vm1264 = vweird.f32 %v1258
    %vm1265 = vmor %vm1263, %vm1264
    %v1266 = vsel %vm1265, %v1258, %v1262
    %v1267 = vand.u32 2147483647, %v1226
    %vm1268 = vcmp.eq.f32.partialorder %v1267, 8.507059e+37
    %v1269 = vand.u32 %v1226, 2147483648
    %v1270 = vor.u32 1.1754944e-38, %v1269
    %v1271 = vsel %vm1268, %v1270, %v1266
    %v1272 = vmul.f32 1.0, %v1271
    %v1273 = vrcp.pop %v1227
    %v1274 = vmul.f32 %v1227, %v1273
    %v1275 = vsub.f32 1.0, %v1274
    %v1276 = vmul.f32 %v1273, %v1275
    %v1277 = vadd.f32 %v1273, %v1276
    %vm1278 = vweird.f32 %v1227
    %vm1279 = vweird.f32 %v1273
    %vm1280 = vmor %vm1278, %vm1279
    %v1281 = vsel %vm1280, %v1273, %v1277
    %v1282 = vand.u32 2147483647, %v1227
    %vm1283 = vcmp.eq.f32.partialorder %v1282, 8.507059e+37
    %v1284 = vand.u32 %v1227, 2147483648
    %v1285 = vor.u32 1.1754944e-38, %v1284
    %v1286 = vsel %vm1283, %v1285, %v1281
    %v1287 = vmul.f32 1.0, %v1286
    %v1288 = vmul.f32 %v1208, %v1242
    %v1289 = vmul.f32 %v1209, %v1257
    %v1290 = vmul.f32 %v1210, %v1272
    %v1291 = vmul.f32 %v1211, %v1287
    %v1292 = vpack.c.bf16 %v1290, %v1288
    %v1293 = vpack.c.bf16 %v1291, %v1289
    %s1294 = scalar_lea.vmem %s4, 24
    %v1295 = vld [vmem:[%s1294] sm:$0xf]
    %v1296 = vld [vmem:[%s1294 + $0x4] sm:$0xf]
    %v1299 = vunpack.c.l.b16 %v1295
    %v1300 = vunpack.c.l.b16 %v1296
    %v1301 = vpack.c.b16 %v1300, %v1299
    %v1303 = vsel %vm556, %v1301, 0
    %1305 = vmatpush.bf16.msra.mxu0 0
    %1306 = vmatpush.bf16.msra.mxu0 0
    %1307 = vmatpush.bf16.msra.mxu0 0
    %1308 = vmatpush.bf16.msra.mxu0 0
    %1309 = vmatpush.bf16.msra.mxu0 0
    %1310 = vmatpush.bf16.msra.mxu0 0
    %1311 = vmatpush.bf16.msra.mxu0 %v423
    %1312 = vmatpush.bf16.msra.mxu0 %v1292
    %1313 = vmatmul.bf16.gmra.mxu0 %v1303
    %v1314 = vpop.f32.mrf.mxu0
    %v1315 = vadd.f32 %v1071, %v1314
    %v1316 = vpop.f32.mrf.mxu0
    %v1317 = vadd.f32 %v1073, %v1316
    %1318 = vdwg.mxu0
    %1319 = vmatpush.bf16.msra.mxu0 0
    %1320 = vmatpush.bf16.msra.mxu0 0
    %1321 = vmatpush.bf16.msra.mxu0 0
    %1322 = vmatpush.bf16.msra.mxu0 0
    %1323 = vmatpush.bf16.msra.mxu0 0
    %1324 = vmatpush.bf16.msra.mxu0 0
    %1325 = vmatpush.bf16.msra.mxu0 %v423
    %1326 = vmatpush.bf16.msra.mxu0 %v1293
    %1327 = vmatmul.bf16.gmra.mxu0 %v1303
    %v1328 = vpop.f32.mrf.mxu0
    %v1329 = vadd.f32 %v1085, %v1328
    %v1330 = vpop.f32.mrf.mxu0
    %v1331 = vadd.f32 %v1087, %v1330
    %1332 = vdwg.mxu0
    %s1333 = scalar_lea.vmem %s5, 96
    %1334 = vst [vmem:[%s1333] sm:$0xff] %v1315
    %1335 = vst [vmem:[%s1333 + $0x8] sm:$0xff] %v1317
    %s1336 = scalar_lea.vmem %s5, 112
    %1337 = vst [vmem:[%s1336] sm:$0xff] %v1329
    %1338 = vst [vmem:[%s1336 + $0x8] sm:$0xff] %v1331
    // Predicated region
    $region26: #{wavenet_convs_forward.1} parent=1 // pred_check
      _
    $region27: #{wavenet_convs_forward.1} parent=1 // pred_check_branch
      %1340 = sbr.rel (0) target = $region29
    $region28: #{wavenet_convs_forward.1} parent=1 // pred_region
      _
    $region29: #{wavenet_convs_forward.1} parent=1 // pred_fallthru
      _
    // Predicated region
    $region30: #{wavenet_convs_forward.1} parent=1 // pred_check
      _
    $region31: #{wavenet_convs_forward.1} parent=1 // pred_check_branch
      %1342 = sbr.rel (0) target = $region33
    $region32: #{wavenet_convs_forward.1} parent=1 // pred_region
      _
    $region33: #{wavenet_convs_forward.1} parent=1 // pred_fallthru
      _
    %1343 = vsyncpa [#allocation3], 1

</llo_original>
